<compile_context>
chip_gen: v7x
topology: tpu7x:2x2x1
jax: 0.10.0
libtpu: 0.0.40
codegen_flags: <defaults>
</compile_context>

<pallas_src>
import functools

import jax
import jax.numpy as jnp
from jax.experimental import pallas as pl
from jax.experimental.pallas import tpu as pltpu

_NEG = -1.0e30          # finite stand-in for -inf inside the kernel
_INF_THRESH = 1.0e29    # per-sample losses above this count as "infinite"


def _ctc_kernel(x_ref, tgt_ref, loss_ref, lpb_ref, lpl_ref, alpha_ref, *,
                nt, rem, blank_orig, exp_bf16):
    """Stage-skewed CTC forward: softmax of block t + recursion of block t-1.

    x_ref  : (time_tile, C, batch_tile) raw scores (class on sublanes,
             batch on lanes).
    tgt_ref: (1, batch_tile) int32 original-class label per sample.
    loss_ref: (1, batch_tile) per-sample -log p(target|input), written on the
             drain step.
    lpb_ref/lpl_ref: (2*time_tile, batch_tile) double-buffered blank/label
             log-prob scratch (slot = time-block parity).
    alpha_ref: (3, batch_tile) running alpha for states (blank, label, blank).
    """
    t = pl.program_id(1)
    time_tile, num_classes, batch_tile = x_ref.shape

    neg_row = jnp.full((1, batch_tile), _NEG, jnp.float32)

    def softmax_stage(wbase):
        # Fused class-roll + log_softmax gather: only the blank (original class
        # `blank_orig`) and the per-sample label log-probs are ever needed, so
        # the rolled/concatenated tensor is never materialized.
        x = x_ref[...].astype(jnp.float32)                      # (TT, C, B)
        m = jnp.max(x, axis=1, keepdims=True)                   # (TT, 1, B)
        xm = x - m
        if exp_bf16:
            # Optional bf16 exp (v6e/v7x EUP); off by default to keep exact
            # f32 parity with the reference.
            e = jnp.exp(xm.astype(jnp.bfloat16)).astype(jnp.float32)
        else:
            e = jnp.exp(xm)
        lse = jnp.log(jnp.sum(e, axis=1)) + m[:, 0, :]          # (TT, B)

        labels = tgt_ref[...]                                   # (1, B) int32
        cls = jax.lax.broadcasted_iota(jnp.int32,
                                       (num_classes, batch_tile), 0)
        onehot = (cls == labels).astype(jnp.float32)            # (C, B)

        lp_blank = x[:, blank_orig, :] - lse                    # (TT, B)
        lp_label = jnp.sum(x * onehot[None, :, :], axis=1) - lse

        lpb_ref[pl.ds(wbase, time_tile), :] = lp_blank
        lpl_ref[pl.ds(wbase, time_tile), :] = lp_label

    def recursion_stage(rbase, steps, final):
        # Uniform packed recursion: alpha' = logaddexp(alpha, shift(alpha)) + lp
        # with shift = [-inf, a0, a1] and lp = [lp_blank, lp_label, lp_blank].
        # One exp + one log per time step on the serial critical path.
        a0 = alpha_ref[...]                                     # (3, B)

        def step(i, a):
            lb = lpb_ref[pl.ds(rbase + i, 1), :]                # (1, B)
            ll = lpl_ref[pl.ds(rbase + i, 1), :]
            blk = jnp.concatenate([lb, ll, lb], axis=0)         # (3, B)
            sh = jnp.concatenate([neg_row, a[0:2, :]], axis=0)  # [-inf, a0, a1]
            m = jnp.maximum(a, sh)
            return m + jnp.log(1.0 + jnp.exp(-jnp.abs(a - sh))) + blk

        unroll = True if steps <= 128 else 8
        a = jax.lax.fori_loop(0, steps, step, a0, unroll=unroll)
        alpha_ref[...] = a

        if final:
            b1, b2 = a[1:2, :], a[2:3, :]
            m = jnp.maximum(b1, b2)
            loss_ref[...] = -(m + jnp.log(1.0 + jnp.exp(-jnp.abs(b1 - b2))))

    @pl.when(t == 0)
    def _():
        # "Virtual" alpha init one step before t=0: [0, -inf, -inf].  Makes the
        # per-block recursion loops uniform (no start-at-1 special case and no
        # per-step validity masks on the critical chain).
        alpha_ref[0:1, :] = jnp.zeros((1, batch_tile), jnp.float32)
        alpha_ref[1:3, :] = jnp.full((2, batch_tile), _NEG, jnp.float32)
        softmax_stage(0)

    if nt == 1:
        @pl.when(t == 1)
        def _():
            recursion_stage(0, rem, True)
    else:
        @pl.when(jnp.logical_and(t >= 1, t < nt))
        def _():
            # Recursion of the PREVIOUS block (independent of this step's
            # softmax) first, then the softmax of the current block into the
            # other slot -> both live in one basic block so their work can be
            # interleaved.
            rslot = jax.lax.rem(t - 1, 2)
            recursion_stage(rslot * time_tile, time_tile, False)
            wslot = jax.lax.rem(t, 2)
            softmax_stage(wslot * time_tile)

        @pl.when(t == nt)
        def _():
            # Drain step: recursion of the last (possibly ragged) block.
            recursion_stage(((nt - 1) % 2) * time_tile, rem, True)


def _device_kind():
    try:
        return jax.devices()[0].device_kind.lower()
    except Exception:
        return ""


def _pick_batch_tile(n_pad, want_two_tiles):
    if n_pad <= 128:
        return n_pad
    for cand in (512, 384, 256, 128):
        if n_pad % cand != 0:
            continue
        if want_two_tiles and cand > 128 and n_pad // cand < 2:
            continue
        return cand
    return 128


def ctc_loss(inp, target, *, input_len, target_len=1, blank=0, time_tile=None,
             exp_in_bf16=False, stream_in_bf16=False):
    """Equivalent of CTC(input_len, target_len, blank).forward(inp, target)."""
    T, N, C = inp.shape
    if target.shape != (N,):
        raise ValueError(f"target must have shape ({N},), got {target.shape}")
    if not (1 <= input_len <= T):
        raise ValueError("input_len must be in [1, T]")
    if target_len != 1:
        # TODO(synk): general multi-symbol CTC targets are not implemented; the
        # PyTorch module only ever supplies a single label per sample.
        raise NotImplementedError("only target_len == 1 is supported")
    # Note: a target equal to C-1 collides with the blank after the class roll
    # (PyTorch would index out of range); callers must keep targets in [0, C-2].

    blank_orig = (blank - 1) % C      # blank index in the *original* class order

    kind = _device_kind()
    is_v7 = ("v7" in kind) or ("7x" in kind)

    # Lane-dense batch: pad N up to a multiple of 128 and pick a batch tile of
    # 128-512 lanes; on v7x prefer >=2 tiles so both TensorCores get work.
    lane = 128
    n_pad = ((N + lane - 1) // lane) * lane
    batch_tile = _pick_batch_tile(n_pad, want_two_tiles=is_v7)
    nb = n_pad // batch_tile

    # Layout: (T, C, N) so the batch fills the 128-lane axis and the class
    # reductions run over sublanes (big win for small alphabets).
    xt = jnp.transpose(inp, (0, 2, 1))
    if stream_in_bf16 and xt.dtype == jnp.float32:
        # Halves HBM traffic (useful on v5e); kernel upcasts to f32 internally.
        xt = xt.astype(jnp.bfloat16)
    tgt = target.astype(jnp.int32)
    if n_pad != N:
        xt = jnp.pad(xt, ((0, 0), (0, 0), (0, n_pad - N)))
        tgt = jnp.pad(tgt, (0, n_pad - N))
    tgt2d = tgt.reshape(1, n_pad)

    itemsize = jnp.dtype(xt.dtype).itemsize
    # Generation-aware VMEM budget: v5e/v6e have 128 MiB VMEM, v7x only 64 MiB
    # per TensorCore (and both cores are active).
    if is_v7:
        x_budget, vmem_limit = 18 * 2**20, 44 * 2**20
    else:
        x_budget, vmem_limit = 30 * 2**20, 96 * 2**20
    # Per time step: 2x double-buffered x rows + 2-slot lpb/lpl scratch rows.
    per_step = 2 * C * batch_tile * itemsize + 16 * batch_tile
    if time_tile is None:
        time_tile = max(1, min(128, x_budget // per_step))
    time_tile = int(min(time_tile, input_len))

    nt = -(-input_len // time_tile)                   # number of time blocks
    rem = input_len - (nt - 1) * time_tile            # steps in the last block
    nt_minus_1 = nt - 1

    grid = (nb, nt + 1)                               # +1 drain step (skewed)

    kernel = functools.partial(_ctc_kernel, nt=int(nt), rem=int(rem),
                               blank_orig=int(blank_orig),
                               exp_bf16=bool(exp_in_bf16))

    cost = pl.CostEstimate(
        flops=int(8 * input_len * n_pad * C + 16 * input_len * n_pad),
        transcendentals=int(input_len * n_pad * (C + 3)),
        bytes_accessed=int(nt * time_tile * C * n_pad * itemsize + 12 * n_pad),
    )

    losses = pl.pallas_call(
        kernel,
        out_shape=jax.ShapeDtypeStruct((1, n_pad), jnp.float32),
        grid_spec=pltpu.PrefetchScalarGridSpec(
            num_scalar_prefetch=0,
            grid=grid,
            in_specs=[
                # Clamp the drain step onto the last block (no OOB fetch, and
                # since the block index repeats no re-DMA happens either).
                pl.BlockSpec((time_tile, C, batch_tile),
                             lambda n, t: (jnp.minimum(t, nt_minus_1), 0, n)),
                pl.BlockSpec((1, batch_tile), lambda n, t: (0, n)),
            ],
            out_specs=pl.BlockSpec((1, batch_tile), lambda n, t: (0, n)),
            scratch_shapes=[
                pltpu.VMEM((2 * time_tile, batch_tile), jnp.float32),  # lp_blank
                pltpu.VMEM((2 * time_tile, batch_tile), jnp.float32),  # lp_label
                pltpu.VMEM((3, batch_tile), jnp.float32),              # alpha
            ],
        ),
        compiler_params=pltpu.CompilerParams(
            dimension_semantics=("parallel", "arbitrary"),
            vmem_limit_bytes=int(vmem_limit)),
        cost_estimate=cost,
    )(xt, tgt2d)[0]                                                   # (n_pad,)

    # zero_infinity=True (also drops the finite _NEG-sentinel "infinities"),
    # mask padded samples, then reduction='mean' over the original batch with
    # the per-sample division by target length.
    valid = jnp.arange(n_pad) < N
    finite = jnp.isfinite(losses) & (losses < _INF_THRESH)
    losses = jnp.where(valid & finite, losses, 0.0)
    return jnp.sum(losses) / (float(N) * float(target_len))


class CTC:
    """Mirror of the PyTorch module (blank=0, reduction='mean', zero_infinity)."""

    def __init__(self, input_len, target_len, blank=0):
        self.input_len = int(input_len)
        self.target_len = int(target_len)
        self.blank = int(blank)

    def __call__(self, inp, target, *, time_tile=None):
        return ctc_loss(inp, target, input_len=self.input_len,
                        target_len=self.target_len, blank=self.blank,
                        time_tile=time_tile)


def _reference_ctc(inp, target, input_len, target_len=1, blank=0):
    """Pure-JAX mirror of the PyTorch forward (roll + log_softmax + CTC, S=1)."""
    T, N, C = inp.shape
    rolled = jnp.concatenate([inp[:, :, -1:], inp[:, :, :-1]], axis=-1)
    lp = jax.nn.log_softmax(rolled, axis=-1)                   # (T, N, C)
    labels = target.astype(jnp.int32) + 1                      # rolled label index
    lp_blank = lp[:, :, blank]                                 # (T, N)
    lp_label = jnp.take_along_axis(lp, labels[None, :, None], axis=-1)[:, :, 0]
    a0 = lp_blank[0]
    a1 = lp_label[0]
    a2 = jnp.full((N,), -jnp.inf, jnp.float32)
    for t in range(1, input_len):
        n0 = a0 + lp_blank[t]
        n1 = jnp.logaddexp(a0, a1) + lp_label[t]
        n2 = jnp.logaddexp(a1, a2) + lp_blank[t]
        a0, a1, a2 = n0, n1, n2
    loss = -jnp.logaddexp(a1, a2)                              # (N,)
    loss = jnp.where(jnp.isinf(loss), 0.0, loss)               # zero_infinity
    return jnp.mean(loss) / float(target_len)


if __name__ == "__main__":
    # Small deterministic example: T=32 timesteps, batch=16, 16 classes.
    T, N, C = 32, 16, 16
    input_len, target_len = 28, 1        # input_len < T exercises the tail logic

    key = jax.random.PRNGKey(0)
    kx, kt = jax.random.split(key)
    x = jax.random.normal(kx, (T, N, C), dtype=jnp.float32)
    target = jax.random.randint(kt, (N,), 0, C - 1, dtype=jnp.int32)  # in [0, C-2]

    ctc = CTC(input_len=input_len, target_len=target_len, blank=0)
    # time_tile=8 -> 4 time blocks + drain step: exercises the skewed pipeline,
    # both lp slots, the ragged last block, and the padded (16->128) batch.
    loss = ctc(x, target, time_tile=8)
    loss = jax.block_until_ready(loss)

    ref = _reference_ctc(x, target, input_len, target_len, blank=0)
    assert jnp.allclose(loss, ref, rtol=1e-4, atol=1e-4), (loss, ref)

    print("KERNEL_OK")
</pallas_src>

<mosaic_0001>
module attributes {stable_mosaic.version = 11 : i64} {
  func.func @_ctc_kernel(%arg0: i32, %arg1: i32, %arg2: memref<8x16x128xf32, #tpu.memory_space<vmem>>, %arg3: memref<1x128xi32, #tpu.memory_space<vmem>>, %arg4: memref<1x128xf32, #tpu.memory_space<vmem>>, %arg5: memref<16x128xf32, #tpu.memory_space<vmem>>, %arg6: memref<16x128xf32, #tpu.memory_space<vmem>>, %arg7: memref<3x128xf32, #tpu.memory_space<vmem>>) attributes {dimension_semantics = [#tpu.dimension_semantics<parallel>, #tpu.dimension_semantics<arbitrary>], iteration_bounds = array<i64: 1, 5>, scalar_prefetch = 0 : i64, scratch_operands = 3 : i64, tpu.core_type = #tpu.core_type<tc>, window_params = [{transform_indices = @transform_0, window_bounds = array<i64: 8, 16, 128>}, {transform_indices = @transform_1, window_bounds = array<i64: 1, 128>}, {transform_indices = @transform_2, window_bounds = array<i64: 1, 128>}]} {
    %cst = arith.constant -1.000000e+30 : f32
    %0 = vector.broadcast %cst : f32 to vector<1x128xf32>
    %c0_i32 = arith.constant 0 : i32
    %1 = arith.cmpi eq, %arg1, %c0_i32 : i32
    %2 = arith.extui %1 : i1 to i32
    %c0_i32_0 = arith.constant 0 : i32
    %3 = arith.cmpi ne, %2, %c0_i32_0 : i32
    scf.if %3 {
      %cst_4 = arith.constant 0.000000e+00 : f32
      %12 = vector.broadcast %cst_4 : f32 to vector<1x128xf32>
      %c0 = arith.constant 0 : index
      %c0_5 = arith.constant 0 : index
      %13 = vector.load %arg7[%c0, %c0_5] : memref<3x128xf32, #tpu.memory_space<vmem>>, vector<1x128xf32>
      tpu.vector_store %arg7[%c0, %c0_5], %12 {strides = array<i32>} : memref<3x128xf32, #tpu.memory_space<vmem>>, vector<1x128xf32>,
      %cst_6 = arith.constant -1.000000e+30 : f32
      %14 = vector.broadcast %cst_6 : f32 to vector<2x128xf32>
      %c1 = arith.constant 1 : index
      %c0_7 = arith.constant 0 : index
      %15 = vector.load %arg7[%c1, %c0_7] : memref<3x128xf32, #tpu.memory_space<vmem>>, vector<2x128xf32>
      tpu.vector_store %arg7[%c1, %c0_7], %14 {strides = array<i32>} : memref<3x128xf32, #tpu.memory_space<vmem>>, vector<2x128xf32>,
      %c0_8 = arith.constant 0 : index
      %c0_9 = arith.constant 0 : index
      %c0_10 = arith.constant 0 : index
      %16 = vector.load %arg2[%c0_8, %c0_9, %c0_10] : memref<8x16x128xf32, #tpu.memory_space<vmem>>, vector<8x16x128xf32>
      %cst_11 = arith.constant dense<0xFF800000> : vector<8x128xf32>
      %17 = vector.multi_reduction <maximumf>, %16, %cst_11 [1] : vector<8x16x128xf32> to vector<8x128xf32>
      %18 = vector.shape_cast %17 : vector<8x128xf32> to vector<8x1x128xf32>
      %19 = vector.broadcast %18 : vector<8x1x128xf32> to vector<8x16x128xf32>
      %20 = arith.subf %16, %19 : vector<8x16x128xf32>
      %21 = math.exp %20 : vector<8x16x128xf32>
      %cst_12 = arith.constant dense<0.000000e+00> : vector<8x128xf32>
      %22 = vector.multi_reduction <add>, %21, %cst_12 [1] : vector<8x16x128xf32> to vector<8x128xf32>
      %23 = math.log %22 : vector<8x128xf32>
      %24 = vector.shape_cast %18 : vector<8x1x128xf32> to vector<8x128xf32>
      %25 = arith.addf %23, %24 : vector<8x128xf32>
      %c0_13 = arith.constant 0 : index
      %c0_14 = arith.constant 0 : index
      %26 = vector.load %arg3[%c0_13, %c0_14] : memref<1x128xi32, #tpu.memory_space<vmem>>, vector<1x128xi32>
      %27 = tpu.iota {dimensions = array<i32: 0>} : vector<16x128xi32>
      %28 = vector.broadcast %26 : vector<1x128xi32> to vector<16x128xi32>
      %29 = arith.cmpi eq, %27, %28 : vector<16x128xi32>
      %30 = arith.extui %29 : vector<16x128xi1> to vector<16x128xi32>
      %31 = arith.sitofp %30 : vector<16x128xi32> to vector<16x128xf32>
      %32 = vector.extract_strided_slice %16 {offsets = [0, 15, 0], sizes = [8, 1, 128], strides = [1, 1, 1]} : vector<8x16x128xf32> to vector<8x1x128xf32>
      %33 = vector.shape_cast %32 : vector<8x1x128xf32> to vector<8x128xf32>
      %34 = arith.subf %33, %25 : vector<8x128xf32>
      %35 = vector.shape_cast %31 : vector<16x128xf32> to vector<1x16x128xf32>
      %36 = vector.broadcast %35 : vector<1x16x128xf32> to vector<8x16x128xf32>
      %37 = arith.mulf %16, %36 : vector<8x16x128xf32>
      %cst_15 = arith.constant dense<0.000000e+00> : vector<8x128xf32>
      %38 = vector.multi_reduction <add>, %37, %cst_15 [1] : vector<8x16x128xf32> to vector<8x128xf32>
      %39 = arith.subf %38, %25 : vector<8x128xf32>
      %c0_16 = arith.constant 0 : index
      %c0_17 = arith.constant 0 : index
      %40 = vector.load %arg5[%c0_16, %c0_17] : memref<16x128xf32, #tpu.memory_space<vmem>>, vector<8x128xf32>
      tpu.vector_store %arg5[%c0_16, %c0_17], %34 {strides = array<i32>} : memref<16x128xf32, #tpu.memory_space<vmem>>, vector<8x128xf32>,
      %c0_18 = arith.constant 0 : index
      %c0_19 = arith.constant 0 : index
      %41 = vector.load %arg6[%c0_18, %c0_19] : memref<16x128xf32, #tpu.memory_space<vmem>>, vector<8x128xf32>
      tpu.vector_store %arg6[%c0_18, %c0_19], %39 {strides = array<i32>} : memref<16x128xf32, #tpu.memory_space<vmem>>, vector<8x128xf32>,
    } else {
    }
    %c1_i32 = arith.constant 1 : i32
    %4 = arith.cmpi sge, %arg1, %c1_i32 : i32
    %c4_i32 = arith.constant 4 : i32
    %5 = arith.cmpi slt, %arg1, %c4_i32 : i32
    %6 = arith.andi %4, %5 : i1
    %7 = arith.extui %6 : i1 to i32
    %c0_i32_1 = arith.constant 0 : i32
    %8 = arith.cmpi ne, %7, %c0_i32_1 : i32
    scf.if %8 {
      %c1_i32_4 = arith.constant 1 : i32
      %12 = arith.subi %arg1, %c1_i32_4 : i32
      %c2_i32 = arith.constant 2 : i32
      %13 = arith.remsi %12, %c2_i32 : i32
      %c8_i32 = arith.constant 8 : i32
      %14 = arith.muli %13, %c8_i32 : i32
      %c0 = arith.constant 0 : index
      %c0_5 = arith.constant 0 : index
      %15 = vector.load %arg7[%c0, %c0_5] : memref<3x128xf32, #tpu.memory_space<vmem>>, vector<3x128xf32>
      %c0_i32_6 = arith.constant 0 : i32
      %16 = arith.addi %14, %c0_i32_6 : i32
      %17 = arith.index_cast %16 : i32 to index
      %c0_7 = arith.constant 0 : index
      %18 = vector.load %arg5[%17, %c0_7] : memref<16x128xf32, #tpu.memory_space<vmem>>, vector<1x128xf32>
      %19 = arith.addi %14, %c0_i32_6 : i32
      %20 = arith.index_cast %19 : i32 to index
      %c0_8 = arith.constant 0 : index
      %21 = vector.load %arg6[%20, %c0_8] : memref<16x128xf32, #tpu.memory_space<vmem>>, vector<1x128xf32>
      %22 = tpu.concatenate %18, %21, %18 in 0 : vector<1x128xf32>, vector<1x128xf32>, vector<1x128xf32> -> vector<3x128xf32>
      %23 = vector.extract_strided_slice %15 {offsets = [0, 0], sizes = [2, 128], strides = [1, 1]} : vector<3x128xf32> to vector<2x128xf32>
      %24 = tpu.concatenate %0, %23 in 0 : vector<1x128xf32>, vector<2x128xf32> -> vector<3x128xf32>
      %25 = arith.maximumf %15, %24 : vector<3x128xf32>
      %26 = arith.subf %15, %24 : vector<3x128xf32>
      %27 = math.absf %26 : vector<3x128xf32>
      %cst_9 = arith.constant 0.000000e+00 : f32
      %28 = vector.broadcast %cst_9 : f32 to vector<3x128xf32>
      %29 = arith.subf %28, %27 : vector<3x128xf32>
      %30 = math.exp %29 : vector<3x128xf32>
      %cst_10 = arith.constant 1.000000e+00 : f32
      %31 = vector.broadcast %cst_10 : f32 to vector<3x128xf32>
      %32 = arith.addf %31, %30 : vector<3x128xf32>
      %33 = math.log %32 : vector<3x128xf32>
      %34 = arith.addf %25, %33 : vector<3x128xf32>
      %35 = arith.addf %34, %22 : vector<3x128xf32>
      %c1_i32_11 = arith.constant 1 : i32
      %36 = arith.addi %14, %c1_i32_11 : i32
      %37 = arith.index_cast %36 : i32 to index
      %c0_12 = arith.constant 0 : index
      %38 = vector.load %arg5[%37, %c0_12] : memref<16x128xf32, #tpu.memory_space<vmem>>, vector<1x128xf32>
      %39 = arith.addi %14, %c1_i32_11 : i32
      %40 = arith.index_cast %39 : i32 to index
      %c0_13 = arith.constant 0 : index
      %41 = vector.load %arg6[%40, %c0_13] : memref<16x128xf32, #tpu.memory_space<vmem>>, vector<1x128xf32>
      %42 = tpu.concatenate %38, %41, %38 in 0 : vector<1x128xf32>, vector<1x128xf32>, vector<1x128xf32> -> vector<3x128xf32>
      %43 = vector.extract_strided_slice %35 {offsets = [0, 0], sizes = [2, 128], strides = [1, 1]} : vector<3x128xf32> to vector<2x128xf32>
      %44 = tpu.concatenate %0, %43 in 0 : vector<1x128xf32>, vector<2x128xf32> -> vector<3x128xf32>
      %45 = arith.maximumf %35, %44 : vector<3x128xf32>
      %46 = arith.subf %35, %44 : vector<3x128xf32>
      %47 = math.absf %46 : vector<3x128xf32>
      %cst_14 = arith.constant 0.000000e+00 : f32
      %48 = vector.broadcast %cst_14 : f32 to vector<3x128xf32>
      %49 = arith.subf %48, %47 : vector<3x128xf32>
      %50 = math.exp %49 : vector<3x128xf32>
      %cst_15 = arith.constant 1.000000e+00 : f32
      %51 = vector.broadcast %cst_15 : f32 to vector<3x128xf32>
      %52 = arith.addf %51, %50 : vector<3x128xf32>
      %53 = math.log %52 : vector<3x128xf32>
      %54 = arith.addf %45, %53 : vector<3x128xf32>
      %55 = arith.addf %54, %42 : vector<3x128xf32>
      %c2_i32_16 = arith.constant 2 : i32
      %56 = arith.addi %14, %c2_i32_16 : i32
      %57 = arith.index_cast %56 : i32 to index
      %c0_17 = arith.constant 0 : index
      %58 = vector.load %arg5[%57, %c0_17] : memref<16x128xf32, #tpu.memory_space<vmem>>, vector<1x128xf32>
      %59 = arith.addi %14, %c2_i32_16 : i32
      %60 = arith.index_cast %59 : i32 to index
      %c0_18 = arith.constant 0 : index
      %61 = vector.load %arg6[%60, %c0_18] : memref<16x128xf32, #tpu.memory_space<vmem>>, vector<1x128xf32>
      %62 = tpu.concatenate %58, %61, %58 in 0 : vector<1x128xf32>, vector<1x128xf32>, vector<1x128xf32> -> vector<3x128xf32>
      %63 = vector.extract_strided_slice %55 {offsets = [0, 0], sizes = [2, 128], strides = [1, 1]} : vector<3x128xf32> to vector<2x128xf32>
      %64 = tpu.concatenate %0, %63 in 0 : vector<1x128xf32>, vector<2x128xf32> -> vector<3x128xf32>
      %65 = arith.maximumf %55, %64 : vector<3x128xf32>
      %66 = arith.subf %55, %64 : vector<3x128xf32>
      %67 = math.absf %66 : vector<3x128xf32>
      %cst_19 = arith.constant 0.000000e+00 : f32
      %68 = vector.broadcast %cst_19 : f32 to vector<3x128xf32>
      %69 = arith.subf %68, %67 : vector<3x128xf32>
      %70 = math.exp %69 : vector<3x128xf32>
      %cst_20 = arith.constant 1.000000e+00 : f32
      %71 = vector.broadcast %cst_20 : f32 to vector<3x128xf32>
      %72 = arith.addf %71, %70 : vector<3x128xf32>
      %73 = math.log %72 : vector<3x128xf32>
      %74 = arith.addf %65, %73 : vector<3x128xf32>
      %75 = arith.addf %74, %62 : vector<3x128xf32>
      %c3_i32 = arith.constant 3 : i32
      %76 = arith.addi %14, %c3_i32 : i32
      %77 = arith.index_cast %76 : i32 to index
      %c0_21 = arith.constant 0 : index
      %78 = vector.load %arg5[%77, %c0_21] : memref<16x128xf32, #tpu.memory_space<vmem>>, vector<1x128xf32>
      %79 = arith.addi %14, %c3_i32 : i32
      %80 = arith.index_cast %79 : i32 to index
      %c0_22 = arith.constant 0 : index
      %81 = vector.load %arg6[%80, %c0_22] : memref<16x128xf32, #tpu.memory_space<vmem>>, vector<1x128xf32>
      %82 = tpu.concatenate %78, %81, %78 in 0 : vector<1x128xf32>, vector<1x128xf32>, vector<1x128xf32> -> vector<3x128xf32>
      %83 = vector.extract_strided_slice %75 {offsets = [0, 0], sizes = [2, 128], strides = [1, 1]} : vector<3x128xf32> to vector<2x128xf32>
      %84 = tpu.concatenate %0, %83 in 0 : vector<1x128xf32>, vector<2x128xf32> -> vector<3x128xf32>
      %85 = arith.maximumf %75, %84 : vector<3x128xf32>
      %86 = arith.subf %75, %84 : vector<3x128xf32>
      %87 = math.absf %86 : vector<3x128xf32>
      %cst_23 = arith.constant 0.000000e+00 : f32
      %88 = vector.broadcast %cst_23 : f32 to vector<3x128xf32>
      %89 = arith.subf %88, %87 : vector<3x128xf32>
      %90 = math.exp %89 : vector<3x128xf32>
      %cst_24 = arith.constant 1.000000e+00 : f32
      %91 = vector.broadcast %cst_24 : f32 to vector<3x128xf32>
      %92 = arith.addf %91, %90 : vector<3x128xf32>
      %93 = math.log %92 : vector<3x128xf32>
      %94 = arith.addf %85, %93 : vector<3x128xf32>
      %95 = arith.addf %94, %82 : vector<3x128xf32>
      %c4_i32_25 = arith.constant 4 : i32
      %96 = arith.addi %14, %c4_i32_25 : i32
      %97 = arith.index_cast %96 : i32 to index
      %c0_26 = arith.constant 0 : index
      %98 = vector.load %arg5[%97, %c0_26] : memref<16x128xf32, #tpu.memory_space<vmem>>, vector<1x128xf32>
      %99 = arith.addi %14, %c4_i32_25 : i32
      %100 = arith.index_cast %99 : i32 to index
      %c0_27 = arith.constant 0 : index
      %101 = vector.load %arg6[%100, %c0_27] : memref<16x128xf32, #tpu.memory_space<vmem>>, vector<1x128xf32>
      %102 = tpu.concatenate %98, %101, %98 in 0 : vector<1x128xf32>, vector<1x128xf32>, vector<1x128xf32> -> vector<3x128xf32>
      %103 = vector.extract_strided_slice %95 {offsets = [0, 0], sizes = [2, 128], strides = [1, 1]} : vector<3x128xf32> to vector<2x128xf32>
      %104 = tpu.concatenate %0, %103 in 0 : vector<1x128xf32>, vector<2x128xf32> -> vector<3x128xf32>
      %105 = arith.maximumf %95, %104 : vector<3x128xf32>
      %106 = arith.subf %95, %104 : vector<3x128xf32>
      %107 = math.absf %106 : vector<3x128xf32>
      %cst_28 = arith.constant 0.000000e+00 : f32
      %108 = vector.broadcast %cst_28 : f32 to vector<3x128xf32>
      %109 = arith.subf %108, %107 : vector<3x128xf32>
      %110 = math.exp %109 : vector<3x128xf32>
      %cst_29 = arith.constant 1.000000e+00 : f32
      %111 = vector.broadcast %cst_29 : f32 to vector<3x128xf32>
      %112 = arith.addf %111, %110 : vector<3x128xf32>
      %113 = math.log %112 : vector<3x128xf32>
      %114 = arith.addf %105, %113 : vector<3x128xf32>
      %115 = arith.addf %114, %102 : vector<3x128xf32>
      %c5_i32 = arith.constant 5 : i32
      %116 = arith.addi %14, %c5_i32 : i32
      %117 = arith.index_cast %116 : i32 to index
      %c0_30 = arith.constant 0 : index
      %118 = vector.load %arg5[%117, %c0_30] : memref<16x128xf32, #tpu.memory_space<vmem>>, vector<1x128xf32>
      %119 = arith.addi %14, %c5_i32 : i32
      %120 = arith.index_cast %119 : i32 to index
      %c0_31 = arith.constant 0 : index
      %121 = vector.load %arg6[%120, %c0_31] : memref<16x128xf32, #tpu.memory_space<vmem>>, vector<1x128xf32>
      %122 = tpu.concatenate %118, %121, %118 in 0 : vector<1x128xf32>, vector<1x128xf32>, vector<1x128xf32> -> vector<3x128xf32>
      %123 = vector.extract_strided_slice %115 {offsets = [0, 0], sizes = [2, 128], strides = [1, 1]} : vector<3x128xf32> to vector<2x128xf32>
      %124 = tpu.concatenate %0, %123 in 0 : vector<1x128xf32>, vector<2x128xf32> -> vector<3x128xf32>
      %125 = arith.maximumf %115, %124 : vector<3x128xf32>
      %126 = arith.subf %115, %124 : vector<3x128xf32>
      %127 = math.absf %126 : vector<3x128xf32>
      %cst_32 = arith.constant 0.000000e+00 : f32
      %128 = vector.broadcast %cst_32 : f32 to vector<3x128xf32>
      %129 = arith.subf %128, %127 : vector<3x128xf32>
      %130 = math.exp %129 : vector<3x128xf32>
      %cst_33 = arith.constant 1.000000e+00 : f32
      %131 = vector.broadcast %cst_33 : f32 to vector<3x128xf32>
      %132 = arith.addf %131, %130 : vector<3x128xf32>
      %133 = math.log %132 : vector<3x128xf32>
      %134 = arith.addf %125, %133 : vector<3x128xf32>
      %135 = arith.addf %134, %122 : vector<3x128xf32>
      %c6_i32 = arith.constant 6 : i32
      %136 = arith.addi %14, %c6_i32 : i32
      %137 = arith.index_cast %136 : i32 to index
      %c0_34 = arith.constant 0 : index
      %138 = vector.load %arg5[%137, %c0_34] : memref<16x128xf32, #tpu.memory_space<vmem>>, vector<1x128xf32>
      %139 = arith.addi %14, %c6_i32 : i32
      %140 = arith.index_cast %139 : i32 to index
      %c0_35 = arith.constant 0 : index
      %141 = vector.load %arg6[%140, %c0_35] : memref<16x128xf32, #tpu.memory_space<vmem>>, vector<1x128xf32>
      %142 = tpu.concatenate %138, %141, %138 in 0 : vector<1x128xf32>, vector<1x128xf32>, vector<1x128xf32> -> vector<3x128xf32>
      %143 = vector.extract_strided_slice %135 {offsets = [0, 0], sizes = [2, 128], strides = [1, 1]} : vector<3x128xf32> to vector<2x128xf32>
      %144 = tpu.concatenate %0, %143 in 0 : vector<1x128xf32>, vector<2x128xf32> -> vector<3x128xf32>
      %145 = arith.maximumf %135, %144 : vector<3x128xf32>
      %146 = arith.subf %135, %144 : vector<3x128xf32>
      %147 = math.absf %146 : vector<3x128xf32>
      %cst_36 = arith.constant 0.000000e+00 : f32
      %148 = vector.broadcast %cst_36 : f32 to vector<3x128xf32>
      %149 = arith.subf %148, %147 : vector<3x128xf32>
      %150 = math.exp %149 : vector<3x128xf32>
      %cst_37 = arith.constant 1.000000e+00 : f32
      %151 = vector.broadcast %cst_37 : f32 to vector<3x128xf32>
      %152 = arith.addf %151, %150 : vector<3x128xf32>
      %153 = math.log %152 : vector<3x128xf32>
      %154 = arith.addf %145, %153 : vector<3x128xf32>
      %155 = arith.addf %154, %142 : vector<3x128xf32>
      %c7_i32 = arith.constant 7 : i32
      %156 = arith.addi %14, %c7_i32 : i32
      %157 = arith.index_cast %156 : i32 to index
      %c0_38 = arith.constant 0 : index
      %158 = vector.load %arg5[%157, %c0_38] : memref<16x128xf32, #tpu.memory_space<vmem>>, vector<1x128xf32>
      %159 = arith.addi %14, %c7_i32 : i32
      %160 = arith.index_cast %159 : i32 to index
      %c0_39 = arith.constant 0 : index
      %161 = vector.load %arg6[%160, %c0_39] : memref<16x128xf32, #tpu.memory_space<vmem>>, vector<1x128xf32>
      %162 = tpu.concatenate %158, %161, %158 in 0 : vector<1x128xf32>, vector<1x128xf32>, vector<1x128xf32> -> vector<3x128xf32>
      %163 = vector.extract_strided_slice %155 {offsets = [0, 0], sizes = [2, 128], strides = [1, 1]} : vector<3x128xf32> to vector<2x128xf32>
      %164 = tpu.concatenate %0, %163 in 0 : vector<1x128xf32>, vector<2x128xf32> -> vector<3x128xf32>
      %165 = arith.maximumf %155, %164 : vector<3x128xf32>
      %166 = arith.subf %155, %164 : vector<3x128xf32>
      %167 = math.absf %166 : vector<3x128xf32>
      %cst_40 = arith.constant 0.000000e+00 : f32
      %168 = vector.broadcast %cst_40 : f32 to vector<3x128xf32>
      %169 = arith.subf %168, %167 : vector<3x128xf32>
      %170 = math.exp %169 : vector<3x128xf32>
      %cst_41 = arith.constant 1.000000e+00 : f32
      %171 = vector.broadcast %cst_41 : f32 to vector<3x128xf32>
      %172 = arith.addf %171, %170 : vector<3x128xf32>
      %173 = math.log %172 : vector<3x128xf32>
      %174 = arith.addf %165, %173 : vector<3x128xf32>
      %175 = arith.addf %174, %162 : vector<3x128xf32>
      %c8_i32_42 = arith.constant 8 : i32
      %c0_43 = arith.constant 0 : index
      %c0_44 = arith.constant 0 : index
      %176 = vector.load %arg7[%c0_43, %c0_44] : memref<3x128xf32, #tpu.memory_space<vmem>>, vector<3x128xf32>
      tpu.vector_store %arg7[%c0_43, %c0_44], %175 {strides = array<i32>} : memref<3x128xf32, #tpu.memory_space<vmem>>, vector<3x128xf32>,
      %c2_i32_45 = arith.constant 2 : i32
      %177 = arith.remsi %arg1, %c2_i32_45 : i32
      %c8_i32_46 = arith.constant 8 : i32
      %178 = arith.muli %177, %c8_i32_46 : i32
      %c0_47 = arith.constant 0 : index
      %c0_48 = arith.constant 0 : index
      %c0_49 = arith.constant 0 : index
      %179 = vector.load %arg2[%c0_47, %c0_48, %c0_49] : memref<8x16x128xf32, #tpu.memory_space<vmem>>, vector<8x16x128xf32>
      %cst_50 = arith.constant dense<0xFF800000> : vector<8x128xf32>
      %180 = vector.multi_reduction <maximumf>, %179, %cst_50 [1] : vector<8x16x128xf32> to vector<8x128xf32>
      %181 = vector.shape_cast %180 : vector<8x128xf32> to vector<8x1x128xf32>
      %182 = vector.broadcast %181 : vector<8x1x128xf32> to vector<8x16x128xf32>
      %183 = arith.subf %179, %182 : vector<8x16x128xf32>
      %184 = math.exp %183 : vector<8x16x128xf32>
      %cst_51 = arith.constant dense<0.000000e+00> : vector<8x128xf32>
      %185 = vector.multi_reduction <add>, %184, %cst_51 [1] : vector<8x16x128xf32> to vector<8x128xf32>
      %186 = math.log %185 : vector<8x128xf32>
      %187 = vector.shape_cast %181 : vector<8x1x128xf32> to vector<8x128xf32>
      %188 = arith.addf %186, %187 : vector<8x128xf32>
      %c0_52 = arith.constant 0 : index
      %c0_53 = arith.constant 0 : index
      %189 = vector.load %arg3[%c0_52, %c0_53] : memref<1x128xi32, #tpu.memory_space<vmem>>, vector<1x128xi32>
      %190 = tpu.iota {dimensions = array<i32: 0>} : vector<16x128xi32>
      %191 = vector.broadcast %189 : vector<1x128xi32> to vector<16x128xi32>
      %192 = arith.cmpi eq, %190, %191 : vector<16x128xi32>
      %193 = arith.extui %192 : vector<16x128xi1> to vector<16x128xi32>
      %194 = arith.sitofp %193 : vector<16x128xi32> to vector<16x128xf32>
      %195 = vector.extract_strided_slice %179 {offsets = [0, 15, 0], sizes = [8, 1, 128], strides = [1, 1, 1]} : vector<8x16x128xf32> to vector<8x1x128xf32>
      %196 = vector.shape_cast %195 : vector<8x1x128xf32> to vector<8x128xf32>
      %197 = arith.subf %196, %188 : vector<8x128xf32>
      %198 = vector.shape_cast %194 : vector<16x128xf32> to vector<1x16x128xf32>
      %199 = vector.broadcast %198 : vector<1x16x128xf32> to vector<8x16x128xf32>
      %200 = arith.mulf %179, %199 : vector<8x16x128xf32>
      %cst_54 = arith.constant dense<0.000000e+00> : vector<8x128xf32>
      %201 = vector.multi_reduction <add>, %200, %cst_54 [1] : vector<8x16x128xf32> to vector<8x128xf32>
      %202 = arith.subf %201, %188 : vector<8x128xf32>
      %203 = arith.index_cast %178 : i32 to index
      %c0_55 = arith.constant 0 : index
      %204 = vector.load %arg5[%203, %c0_55] : memref<16x128xf32, #tpu.memory_space<vmem>>, vector<8x128xf32>
      tpu.vector_store %arg5[%203, %c0_55], %197 {strides = array<i32>} : memref<16x128xf32, #tpu.memory_space<vmem>>, vector<8x128xf32>,
      %205 = arith.index_cast %178 : i32 to index
      %c0_56 = arith.constant 0 : index
      %206 = vector.load %arg6[%205, %c0_56] : memref<16x128xf32, #tpu.memory_space<vmem>>, vector<8x128xf32>
      tpu.vector_store %arg6[%205, %c0_56], %202 {strides = array<i32>} : memref<16x128xf32, #tpu.memory_space<vmem>>, vector<8x128xf32>,
    } else {
    }
    %c4_i32_2 = arith.constant 4 : i32
    %9 = arith.cmpi eq, %arg1, %c4_i32_2 : i32
    %10 = arith.extui %9 : i1 to i32
    %c0_i32_3 = arith.constant 0 : i32
    %11 = arith.cmpi ne, %10, %c0_i32_3 : i32
    scf.if %11 {
      %c0 = arith.constant 0 : index
      %c0_4 = arith.constant 0 : index
      %12 = vector.load %arg7[%c0, %c0_4] : memref<3x128xf32, #tpu.memory_space<vmem>>, vector<3x128xf32>
      %c0_i32_5 = arith.constant 0 : i32
      %c8_i32 = arith.constant 8 : i32
      %13 = arith.addi %c8_i32, %c0_i32_5 : i32
      %14 = arith.index_cast %13 : i32 to index
      %c0_6 = arith.constant 0 : index
      %15 = vector.load %arg5[%14, %c0_6] : memref<16x128xf32, #tpu.memory_space<vmem>>, vector<1x128xf32>
      %c8_i32_7 = arith.constant 8 : i32
      %16 = arith.addi %c8_i32_7, %c0_i32_5 : i32
      %17 = arith.index_cast %16 : i32 to index
      %c0_8 = arith.constant 0 : index
      %18 = vector.load %arg6[%17, %c0_8] : memref<16x128xf32, #tpu.memory_space<vmem>>, vector<1x128xf32>
      %19 = tpu.concatenate %15, %18, %15 in 0 : vector<1x128xf32>, vector<1x128xf32>, vector<1x128xf32> -> vector<3x128xf32>
      %20 = vector.extract_strided_slice %12 {offsets = [0, 0], sizes = [2, 128], strides = [1, 1]} : vector<3x128xf32> to vector<2x128xf32>
      %21 = tpu.concatenate %0, %20 in 0 : vector<1x128xf32>, vector<2x128xf32> -> vector<3x128xf32>
      %22 = arith.maximumf %12, %21 : vector<3x128xf32>
      %23 = arith.subf %12, %21 : vector<3x128xf32>
      %24 = math.absf %23 : vector<3x128xf32>
      %cst_9 = arith.constant 0.000000e+00 : f32
      %25 = vector.broadcast %cst_9 : f32 to vector<3x128xf32>
      %26 = arith.subf %25, %24 : vector<3x128xf32>
      %27 = math.exp %26 : vector<3x128xf32>
      %cst_10 = arith.constant 1.000000e+00 : f32
      %28 = vector.broadcast %cst_10 : f32 to vector<3x128xf32>
      %29 = arith.addf %28, %27 : vector<3x128xf32>
      %30 = math.log %29 : vector<3x128xf32>
      %31 = arith.addf %22, %30 : vector<3x128xf32>
      %32 = arith.addf %31, %19 : vector<3x128xf32>
      %c1_i32_11 = arith.constant 1 : i32
      %c8_i32_12 = arith.constant 8 : i32
      %33 = arith.addi %c8_i32_12, %c1_i32_11 : i32
      %34 = arith.index_cast %33 : i32 to index
      %c0_13 = arith.constant 0 : index
      %35 = vector.load %arg5[%34, %c0_13] : memref<16x128xf32, #tpu.memory_space<vmem>>, vector<1x128xf32>
      %c8_i32_14 = arith.constant 8 : i32
      %36 = arith.addi %c8_i32_14, %c1_i32_11 : i32
      %37 = arith.index_cast %36 : i32 to index
      %c0_15 = arith.constant 0 : index
      %38 = vector.load %arg6[%37, %c0_15] : memref<16x128xf32, #tpu.memory_space<vmem>>, vector<1x128xf32>
      %39 = tpu.concatenate %35, %38, %35 in 0 : vector<1x128xf32>, vector<1x128xf32>, vector<1x128xf32> -> vector<3x128xf32>
      %40 = vector.extract_strided_slice %32 {offsets = [0, 0], sizes = [2, 128], strides = [1, 1]} : vector<3x128xf32> to vector<2x128xf32>
      %41 = tpu.concatenate %0, %40 in 0 : vector<1x128xf32>, vector<2x128xf32> -> vector<3x128xf32>
      %42 = arith.maximumf %32, %41 : vector<3x128xf32>
      %43 = arith.subf %32, %41 : vector<3x128xf32>
      %44 = math.absf %43 : vector<3x128xf32>
      %cst_16 = arith.constant 0.000000e+00 : f32
      %45 = vector.broadcast %cst_16 : f32 to vector<3x128xf32>
      %46 = arith.subf %45, %44 : vector<3x128xf32>
      %47 = math.exp %46 : vector<3x128xf32>
      %cst_17 = arith.constant 1.000000e+00 : f32
      %48 = vector.broadcast %cst_17 : f32 to vector<3x128xf32>
      %49 = arith.addf %48, %47 : vector<3x128xf32>
      %50 = math.log %49 : vector<3x128xf32>
      %51 = arith.addf %42, %50 : vector<3x128xf32>
      %52 = arith.addf %51, %39 : vector<3x128xf32>
      %c2_i32 = arith.constant 2 : i32
      %c8_i32_18 = arith.constant 8 : i32
      %53 = arith.addi %c8_i32_18, %c2_i32 : i32
      %54 = arith.index_cast %53 : i32 to index
      %c0_19 = arith.constant 0 : index
      %55 = vector.load %arg5[%54, %c0_19] : memref<16x128xf32, #tpu.memory_space<vmem>>, vector<1x128xf32>
      %c8_i32_20 = arith.constant 8 : i32
      %56 = arith.addi %c8_i32_20, %c2_i32 : i32
      %57 = arith.index_cast %56 : i32 to index
      %c0_21 = arith.constant 0 : index
      %58 = vector.load %arg6[%57, %c0_21] : memref<16x128xf32, #tpu.memory_space<vmem>>, vector<1x128xf32>
      %59 = tpu.concatenate %55, %58, %55 in 0 : vector<1x128xf32>, vector<1x128xf32>, vector<1x128xf32> -> vector<3x128xf32>
      %60 = vector.extract_strided_slice %52 {offsets = [0, 0], sizes = [2, 128], strides = [1, 1]} : vector<3x128xf32> to vector<2x128xf32>
      %61 = tpu.concatenate %0, %60 in 0 : vector<1x128xf32>, vector<2x128xf32> -> vector<3x128xf32>
      %62 = arith.maximumf %52, %61 : vector<3x128xf32>
      %63 = arith.subf %52, %61 : vector<3x128xf32>
      %64 = math.absf %63 : vector<3x128xf32>
      %cst_22 = arith.constant 0.000000e+00 : f32
      %65 = vector.broadcast %cst_22 : f32 to vector<3x128xf32>
      %66 = arith.subf %65, %64 : vector<3x128xf32>
      %67 = math.exp %66 : vector<3x128xf32>
      %cst_23 = arith.constant 1.000000e+00 : f32
      %68 = vector.broadcast %cst_23 : f32 to vector<3x128xf32>
      %69 = arith.addf %68, %67 : vector<3x128xf32>
      %70 = math.log %69 : vector<3x128xf32>
      %71 = arith.addf %62, %70 : vector<3x128xf32>
      %72 = arith.addf %71, %59 : vector<3x128xf32>
      %c3_i32 = arith.constant 3 : i32
      %c8_i32_24 = arith.constant 8 : i32
      %73 = arith.addi %c8_i32_24, %c3_i32 : i32
      %74 = arith.index_cast %73 : i32 to index
      %c0_25 = arith.constant 0 : index
      %75 = vector.load %arg5[%74, %c0_25] : memref<16x128xf32, #tpu.memory_space<vmem>>, vector<1x128xf32>
      %c8_i32_26 = arith.constant 8 : i32
      %76 = arith.addi %c8_i32_26, %c3_i32 : i32
      %77 = arith.index_cast %76 : i32 to index
      %c0_27 = arith.constant 0 : index
      %78 = vector.load %arg6[%77, %c0_27] : memref<16x128xf32, #tpu.memory_space<vmem>>, vector<1x128xf32>
      %79 = tpu.concatenate %75, %78, %75 in 0 : vector<1x128xf32>, vector<1x128xf32>, vector<1x128xf32> -> vector<3x128xf32>
      %80 = vector.extract_strided_slice %72 {offsets = [0, 0], sizes = [2, 128], strides = [1, 1]} : vector<3x128xf32> to vector<2x128xf32>
      %81 = tpu.concatenate %0, %80 in 0 : vector<1x128xf32>, vector<2x128xf32> -> vector<3x128xf32>
      %82 = arith.maximumf %72, %81 : vector<3x128xf32>
      %83 = arith.subf %72, %81 : vector<3x128xf32>
      %84 = math.absf %83 : vector<3x128xf32>
      %cst_28 = arith.constant 0.000000e+00 : f32
      %85 = vector.broadcast %cst_28 : f32 to vector<3x128xf32>
      %86 = arith.subf %85, %84 : vector<3x128xf32>
      %87 = math.exp %86 : vector<3x128xf32>
      %cst_29 = arith.constant 1.000000e+00 : f32
      %88 = vector.broadcast %cst_29 : f32 to vector<3x128xf32>
      %89 = arith.addf %88, %87 : vector<3x128xf32>
      %90 = math.log %89 : vector<3x128xf32>
      %91 = arith.addf %82, %90 : vector<3x128xf32>
      %92 = arith.addf %91, %79 : vector<3x128xf32>
      %c4_i32_30 = arith.constant 4 : i32
      %c0_31 = arith.constant 0 : index
      %c0_32 = arith.constant 0 : index
      %93 = vector.load %arg7[%c0_31, %c0_32] : memref<3x128xf32, #tpu.memory_space<vmem>>, vector<3x128xf32>
      tpu.vector_store %arg7[%c0_31, %c0_32], %92 {strides = array<i32>} : memref<3x128xf32, #tpu.memory_space<vmem>>, vector<3x128xf32>,
      %94 = vector.extract_strided_slice %92 {offsets = [1, 0], sizes = [1, 128], strides = [1, 1]} : vector<3x128xf32> to vector<1x128xf32>
      %95 = vector.extract_strided_slice %92 {offsets = [2, 0], sizes = [1, 128], strides = [1, 1]} : vector<3x128xf32> to vector<1x128xf32>
      %96 = arith.maximumf %94, %95 : vector<1x128xf32>
      %97 = arith.subf %94, %95 : vector<1x128xf32>
      %98 = math.absf %97 : vector<1x128xf32>
      %cst_33 = arith.constant 0.000000e+00 : f32
      %99 = vector.broadcast %cst_33 : f32 to vector<1x128xf32>
      %100 = arith.subf %99, %98 : vector<1x128xf32>
      %101 = math.exp %100 : vector<1x128xf32>
      %cst_34 = arith.constant 1.000000e+00 : f32
      %102 = vector.broadcast %cst_34 : f32 to vector<1x128xf32>
      %103 = arith.addf %102, %101 : vector<1x128xf32>
      %104 = math.log %103 : vector<1x128xf32>
      %105 = arith.addf %96, %104 : vector<1x128xf32>
      %cst_35 = arith.constant 0.000000e+00 : f32
      %106 = vector.broadcast %cst_35 : f32 to vector<1x128xf32>
      %107 = arith.subf %106, %105 : vector<1x128xf32>
      %c0_36 = arith.constant 0 : index
      %c0_37 = arith.constant 0 : index
      %108 = vector.load %arg4[%c0_36, %c0_37] : memref<1x128xf32, #tpu.memory_space<vmem>>, vector<1x128xf32>
      tpu.vector_store %arg4[%c0_36, %c0_37], %107 {strides = array<i32>} : memref<1x128xf32, #tpu.memory_space<vmem>>, vector<1x128xf32>,
    } else {
    }
    return
  }
  func.func @transform_0(%arg0: i32, %arg1: i32) -> (i32, i32, i32) {
    %c3_i32 = arith.constant 3 : i32
    %0 = arith.minsi %arg1, %c3_i32 : i32
    %c0_i32 = arith.constant 0 : i32
    %c0_i32_0 = arith.constant 0 : i32
    return %0, %c0_i32, %arg0 : i32, i32, i32
  }
  func.func @transform_1(%arg0: i32, %arg1: i32) -> (i32, i32) {
    %c0_i32 = arith.constant 0 : i32
    %c0_i32_0 = arith.constant 0 : i32
    return %c0_i32, %arg0 : i32, i32
  }
  func.func @transform_2(%arg0: i32, %arg1: i32) -> (i32, i32) {
    %c0_i32 = arith.constant 0 : i32
    %c0_i32_0 = arith.constant 0 : i32
    return %c0_i32, %arg0 : i32, i32
  }
}

</mosaic_0001>

<llo_original>
// kernel: tpu_custom_call.1
$region0: #{tpu_custom_call.1}
  #allocation0 [shape = 'u32[]', space=smem, size = 0x4, offset = 0x4, fixed_abs, tag = 'smem constant byte address 0x4 - core index']
  #allocation1 [shape = 'u32[144,128]{1,0:T(1,128)}', space=vmem, size = 0x12000, scoped, tag = 'internal scratch']
  #allocation2 [shape = 'f32[16,128]{1,0:T(8,128)}', space=vmem, size = 0x2000, scoped, tag = 'scratch operand']
  #allocation3 [shape = 'f32[16,128]{1,0:T(8,128)}', space=vmem, size = 0x2000, scoped, tag = 'scratch operand']
  #allocation4 [shape = 'f32[3,128]{1,0:T(4,128)}', space=vmem, size = 0x800, scoped, tag = 'scratch operand']
  %s0 = inlined_call_operand.hbm [shape: f32[32,16,128], index: 0, kind: input, shape index: {}]
  %s1 = inlined_call_operand.hbm [shape: s32[1,128], index: 1, kind: input, shape index: {}]
  %s2 = inlined_call_operand.hbm [shape: f32[1,128], index: 2, kind: output, shape index: {}]
  %s3 = sld [smem:[#allocation0]]
  $region61: #{tpu_custom_call.1} parent=0
    _
  %s5 = ssub.s32 1, %s3
  %s6 = scalar_select 0, %s5, %s3
  $region1: #{tpu_custom_call.1} parent=0
    #allocation5 [shape = 'u8[131072]{0}', space=vmem, size = 0x20000, scoped, tag = 'input window, operand 0']
    #allocation6 [shape = 's32[2]{0}', space=sflag, size = 0x8, scoped, tag = 'scoped memory for tpu_custom_call.1']
    #allocation7 [shape = 's32[2]{0}', space=sflag, size = 0x8, scoped, tag = 'scoped memory for tpu_custom_call.1']
    #allocation8 [shape = 'u8[512]{0}', space=vmem, size = 0x400, scoped, tag = 'input window, operand 1, single buffered']
    #allocation9 [shape = 's32[1]{0}', space=sflag, size = 0x4, scoped, tag = 'scoped memory for tpu_custom_call.1']
    #allocation10 [shape = 'u8[512]{0}', space=vmem, size = 0x400, scoped, tag = 'output window, operand 0, single buffered']
    %7 = vsyncpa [#allocation6], 0
    %s8 = scalar_lea.sflag [#allocation6], 1
    %9 = vsyncpa %s8, 0
    %10 = vsyncpa [#allocation9], 0
    %11 = vsyncpa [#allocation7], 0
    loop: start=0, step=1, limit=7
    $region2: #{tpu_custom_call.1} parent=1 // loop_pre_header
      _
    $region3: #{tpu_custom_call.1} parent=1 // loop_header
      %s13 = sphi 0, %s17
      %p14 = scmp.ge.s32.totalorder %s13, 7
      %s20 = sphi 0, %s32
      %s21 = sphi 0, %s28
      %s22 = sphi 0, %s20
      %s23 = sphi 0, %s21
      %s24 = sphi 0, %s22
      %s25 = sphi 0, %s23
      %s41 = sphi 0, %s43
      %s44 = sphi 0, %s41
      %s45 = sphi 0, %s44
      %s61 = sphi 0, %s45
      %s67 = sphi 0, %s69
      %s70 = sphi 0, %s67
      %s71 = sphi 0, %s70
      %s87 = sphi 0, %s71
      %s93 = sphi 0, %s95
      %s96 = sphi 0, %s93
      %s97 = sphi 0, %s96
      %s113 = sphi 0, %s97
    $region4: #{tpu_custom_call.1} parent=1 // loop_header_branch
      %16 = sbr.rel (%p14) target = $region8
    $region5: #{tpu_custom_call.1} parent=1 // loop_body
      %s18 = ssub.s32 %s13, 1
      %s19 = ssub.s32 %s13, 2
      %s26 = sadd.s32 1, %s21
      %p27 = scmp.ge.s32.totalorder %s26, 5
      %s28 = scalar_select %p27, 0, %s26
      %s29 = sadd.s32 1, %s20
      %s30 = scalar_select %p27, %s29, %s20
      %p31 = scmp.ge.s32.totalorder %s30, 1
      %s32 = scalar_select %p31, 0, %s30
      %p33 = scmp.lt.s32.totalorder %s21, 3
      %s34 = scalar_select %p33, %s21, 3
      %p35 = scmp.lt.s32.totalorder %s28, 3
      %s36 = scalar_select %p35, %s28, 3
      %s37 = ssub.s32 %s34, %s36
      %s38 = ssub.s32 %s20, %s32
      %s39 = sor.u32 %s37, %s38
      %p40 = scmp.eq.s32.totalorder %s39, 0
      %s42 = sadd.s32 %s41, 1
      %s43 = scalar_select %p40, %s41, %s42
      %p46 = pneg %p40
      %p47 = scmp.eq.s32.totalorder %s13, 4
      %p48 = por %p46, %p47
      %p49 = scmp.ne.s32.totalorder %s41, %s44
      %p50 = scmp.eq.s32.totalorder %s13, 0
      %p51 = por %p49, %p50
      %p52 = scmp.ne.s32.totalorder %s41, %s44
      %p53 = scmp.eq.s32.totalorder %s18, 4
      %p54 = por %p52, %p53
      %p55 = scmp.ne.s32.totalorder %s44, %s45
      %p56 = scmp.eq.s32.totalorder %s18, 0
      %p57 = por %p55, %p56
      %p58 = scmp.ne.s32.totalorder %s44, %s45
      %p59 = scmp.eq.s32.totalorder %s19, 4
      %p60 = por %p58, %p59
      %p62 = scmp.ne.s32.totalorder %s45, %s61
      %p63 = scmp.eq.s32.totalorder %s19, 0
      %p64 = por %p62, %p63
      %s65 = ssub.s32 %s20, %s32
      %p66 = scmp.eq.s32.totalorder %s65, 0
      %s68 = sadd.s32 %s67, 1
      %s69 = scalar_select %p66, %s67, %s68
      %p72 = pneg %p66
      %p73 = scmp.eq.s32.totalorder %s13, 4
      %p74 = por %p72, %p73
      %p75 = scmp.ne.s32.totalorder %s67, %s70
      %p76 = scmp.eq.s32.totalorder %s13, 0
      %p77 = por %p75, %p76
      %p78 = scmp.ne.s32.totalorder %s67, %s70
      %p79 = scmp.eq.s32.totalorder %s18, 4
      %p80 = por %p78, %p79
      %p81 = scmp.ne.s32.totalorder %s70, %s71
      %p82 = scmp.eq.s32.totalorder %s18, 0
      %p83 = por %p81, %p82
      %p84 = scmp.ne.s32.totalorder %s70, %s71
      %p85 = scmp.eq.s32.totalorder %s19, 4
      %p86 = por %p84, %p85
      %p88 = scmp.ne.s32.totalorder %s71, %s87
      %p89 = scmp.eq.s32.totalorder %s19, 0
      %p90 = por %p88, %p89
      %s91 = ssub.s32 %s20, %s32
      %p92 = scmp.eq.s32.totalorder %s91, 0
      %s94 = sadd.s32 %s93, 1
      %s95 = scalar_select %p92, %s93, %s94
      %p98 = pneg %p92
      %p99 = scmp.eq.s32.totalorder %s13, 4
      %p100 = por %p98, %p99
      %p101 = scmp.ne.s32.totalorder %s93, %s96
      %p102 = scmp.eq.s32.totalorder %s13, 0
      %p103 = por %p101, %p102
      %p104 = scmp.ne.s32.totalorder %s93, %s96
      %p105 = scmp.eq.s32.totalorder %s18, 4
      %p106 = por %p104, %p105
      %p107 = scmp.ne.s32.totalorder %s96, %s97
      %p108 = scmp.eq.s32.totalorder %s18, 0
      %p109 = por %p107, %p108
      %p110 = scmp.ne.s32.totalorder %s96, %s97
      %p111 = scmp.eq.s32.totalorder %s19, 4
      %p112 = por %p110, %p111
      %p114 = scmp.ne.s32.totalorder %s97, %s113
      %p115 = scmp.eq.s32.totalorder %s19, 0
      %p116 = por %p114, %p115
      %p117 = scmp.le.s32.totalorder 1, %s13
      %p118 = scmp.lt.s32.totalorder %s13, 6
      %p119 = pnand %p117, %p118
      %p120 = pneg %p119
      // Predicated region
      $region9: #{tpu_custom_call.1} parent=5 // pred_check
        _
      $region10: #{tpu_custom_call.1} parent=5 // pred_check_branch
        %122 = sbr.rel (%p119) target = $region12
      $region11: #{tpu_custom_call.1} parent=5 // pred_region
        %s123 = ssub.s32 %s13, 1
        // Predicated region
        $region13: #{tpu_custom_call.1} parent=11 // pred_check
          %p124 = pneg %p83
        $region14: #{tpu_custom_call.1} parent=11 // pred_check_branch
          %126 = sbr.rel (%p124) target = $region16
        $region15: #{tpu_custom_call.1} parent=11 // pred_region
          %s128 = ssub.s32 16, 16
          %129 = vsyncadd [#allocation9], %s128
          %s130 = smul.addr %s22, 16
          %s131 = scalar_lea.hbm %s1, %s130
          %s133 = sshll.u32 [#allocation8], 4
          %s134 = int_to_ptr.vmem [resolvable:$true] %s133
          %136 = dma.hbm_to_vmem [thread:$0]  %s131, 16, %s134, [#allocation9]
        $region16: #{tpu_custom_call.1} parent=11 // pred_fallthru
          _
      $region12: #{tpu_custom_call.1} parent=5 // pred_fallthru
        _
      %p137 = scmp.lt.s32.totalorder %s13, 5
      // Predicated region
      $region17: #{tpu_custom_call.1} parent=5 // pred_check
        %p138 = pneg %p137
      $region18: #{tpu_custom_call.1} parent=5 // pred_check_branch
        %140 = sbr.rel (%p138) target = $region20
      $region19: #{tpu_custom_call.1} parent=5 // pred_region
        // Predicated region
        $region21: #{tpu_custom_call.1} parent=19 // pred_check
          %p141 = pneg %p51
        $region22: #{tpu_custom_call.1} parent=19 // pred_check_branch
          %143 = sbr.rel (%p141) target = $region24
        $region23: #{tpu_custom_call.1} parent=19 // pred_region
          %s144 = sand.u32 %s41, 1
          %s145 = scalar_lea.sflag [#allocation6], %s144
          %s146 = sand.u32 %s41, 1
          %s147 = smul.addr %s146, 128
          %s148 = scalar_lea.vmem [#allocation5], %s147
          %p149 = scmp.lt.s32.totalorder %s21, 3
          %s150 = scalar_select %p149, %s21, 3
          %s151 = smul.u32 8, %s150
          %s153 = ssub.s32 2048, 2048
          %154 = vsyncadd %s145, %s153
          %s155 = smul.addr %s151, 2
          %s156 = sadd.s32 %s20, %s155
          %s157 = smul.addr %s156, 128
          %s158 = scalar_lea.hbm %s0, %s157
          %s159 = sshll.u32 %s148, 4
          %s160 = int_to_ptr.vmem [resolvable:$true] %s159
          %165 = dma.hbm_to_vmem [thread:$0]  %s158, 2048, %s160, %s145, 128, 128, 8
        $region24: #{tpu_custom_call.1} parent=19 // pred_fallthru
          _
      $region20: #{tpu_custom_call.1} parent=5 // pred_fallthru
        _
      %p166 = scmp.le.s32.totalorder 1, %s13
      %p167 = scmp.lt.s32.totalorder %s13, 6
      %p168 = pnand %p166, %p167
      %p169 = pneg %p168
      // Predicated region
      $region25: #{tpu_custom_call.1} parent=5 // pred_check
        _
      $region26: #{tpu_custom_call.1} parent=5 // pred_check_branch
        %171 = sbr.rel (%p168) target = $region28
      $region27: #{tpu_custom_call.1} parent=5 // pred_region
        %s172 = ssub.s32 %s13, 1
        %s173 = sand.u32 %s44, 1
        %s174 = scalar_lea.sflag [#allocation6], %s173
        %s175 = sand.u32 %s44, 1
        %s176 = smul.addr %s175, 128
        %s177 = scalar_lea.vmem [#allocation5], %s176
        // Predicated region
        $region29: #{tpu_custom_call.1} parent=27 // pred_check
          %p178 = pneg %p57
        $region30: #{tpu_custom_call.1} parent=27 // pred_check_branch
          %180 = sbr.rel (%p178) target = $region32
        $region31: #{tpu_custom_call.1} parent=27 // pred_region
          %181 = dma.done %s174, 2048
        $region32: #{tpu_custom_call.1} parent=27 // pred_fallthru
          _
        // Predicated region
        $region33: #{tpu_custom_call.1} parent=27 // pred_check
          %p182 = pneg %p83
        $region34: #{tpu_custom_call.1} parent=27 // pred_check_branch
          %184 = sbr.rel (%p182) target = $region36
        $region35: #{tpu_custom_call.1} parent=27 // pred_region
          %185 = dma.done [#allocation9], 16
        $region36: #{tpu_custom_call.1} parent=27 // pred_fallthru
          _
        %s186 = sand.u32 %s44, 1
        %s187 = scalar_lea.sflag [#allocation6], %s186
        %s188 = sand.u32 %s44, 1
        %s189 = smul.addr %s188, 128
        %s190 = scalar_lea.vmem [#allocation5], %s189
        %p191 = pneg %p57
        %p192 = pneg %p54
        %p193 = pneg %p83
        %p194 = pneg %p80
        %p195 = pneg %p109
        %p196 = pneg %p106
        %p197 = scmp.lt.s32.totalorder %s23, 3
        %s198 = scalar_select %p197, %s23, 3
        %s199 = smul.u32 8, %s198
        %p200 = scmp.eq.s32.totalorder %s23, 0
        // Predicated region
        $region37: #{tpu_custom_call.1} parent=27 // pred_check
          %p201 = pneg %p200
        $region38: #{tpu_custom_call.1} parent=27 // pred_check_branch
          %203 = sbr.rel (%p201) target = $region40
        $region39: #{tpu_custom_call.1} parent=27 // pred_region
          %204 = vst [vmem:[#allocation4] sm:$0x1] 0.0
          %205 = vst [vmem:[#allocation4 + $0x1] sm:$0x3] -1e+30
          %v206 = vld [vmem:[%s177] sm:$0xff]
          %v207 = vld [vmem:[%s177 + $0x8] sm:$0xff]
          %v208 = vld [vmem:[%s177 + $0x10] sm:$0xff]
          %v209 = vld [vmem:[%s177 + $0x18] sm:$0xff]
          %v210 = vld [vmem:[%s177 + $0x20] sm:$0xff]
          %v211 = vld [vmem:[%s177 + $0x28] sm:$0xff]
          %v212 = vld [vmem:[%s177 + $0x30] sm:$0xff]
          %v213 = vld [vmem:[%s177 + $0x38] sm:$0xff]
          %v214 = vld [vmem:[%s177 + $0x40] sm:$0xff]
          %v215 = vld [vmem:[%s177 + $0x48] sm:$0xff]
          %v216 = vld [vmem:[%s177 + $0x50] sm:$0xff]
          %v217 = vld [vmem:[%s177 + $0x58] sm:$0xff]
          %v218 = vld [vmem:[%s177 + $0x60] sm:$0xff]
          %v219 = vld [vmem:[%s177 + $0x68] sm:$0xff]
          %v220 = vld [vmem:[%s177 + $0x70] sm:$0xff]
          %v221 = vld [vmem:[%s177 + $0x78] sm:$0xff]
          %v222 = vmax.f32 %v206, %v207
          %v223 = vrot.slane %v222, 4
          %v224 = vmax.f32 %v222, %v223
          %v225 = vrot.slane %v224, 2
          %v226 = vmax.f32 %v224, %v225
          %v227 = vrot.slane %v226, 1
          %v228 = vmax.f32 %v226, %v227
          %v229 = vmax.f32 %v208, %v209
          %v230 = vrot.slane %v229, 4
          %v231 = vmax.f32 %v229, %v230
          %v232 = vrot.slane %v231, 2
          %v233 = vmax.f32 %v231, %v232
          %v234 = vrot.slane %v233, 1
          %v235 = vmax.f32 %v233, %v234
          %v236 = vmax.f32 %v210, %v211
          %v237 = vrot.slane %v236, 4
          %v238 = vmax.f32 %v236, %v237
          %v239 = vrot.slane %v238, 2
          %v240 = vmax.f32 %v238, %v239
          %v241 = vrot.slane %v240, 1
          %v242 = vmax.f32 %v240, %v241
          %v243 = vmax.f32 %v212, %v213
          %v244 = vrot.slane %v243, 4
          %v245 = vmax.f32 %v243, %v244
          %v246 = vrot.slane %v245, 2
          %v247 = vmax.f32 %v245, %v246
          %v248 = vrot.slane %v247, 1
          %v249 = vmax.f32 %v247, %v248
          %v250 = vmax.f32 %v214, %v215
          %v251 = vrot.slane %v250, 4
          %v252 = vmax.f32 %v250, %v251
          %v253 = vrot.slane %v252, 2
          %v254 = vmax.f32 %v252, %v253
          %v255 = vrot.slane %v254, 1
          %v256 = vmax.f32 %v254, %v255
          %v257 = vmax.f32 %v216, %v217
          %v258 = vrot.slane %v257, 4
          %v259 = vmax.f32 %v257, %v258
          %v260 = vrot.slane %v259, 2
          %v261 = vmax.f32 %v259, %v260
          %v262 = vrot.slane %v261, 1
          %v263 = vmax.f32 %v261, %v262
          %v264 = vmax.f32 %v218, %v219
          %v265 = vrot.slane %v264, 4
          %v266 = vmax.f32 %v264, %v265
          %v267 = vrot.slane %v266, 2
          %v268 = vmax.f32 %v266, %v267
          %v269 = vrot.slane %v268, 1
          %v270 = vmax.f32 %v268, %v269
          %v271 = vmax.f32 %v220, %v221
          %v272 = vrot.slane %v271, 4
          %v273 = vmax.f32 %v271, %v272
          %v274 = vrot.slane %v273, 2
          %v275 = vmax.f32 %v273, %v274
          %v276 = vrot.slane %v275, 1
          %v277 = vmax.f32 %v275, %v276
          %v278 = vsub.f32 %v206, %v228
          %v279 = vsub.f32 %v207, %v228
          %v280 = vsub.f32 %v208, %v235
          %v281 = vsub.f32 %v209, %v235
          %v282 = vsub.f32 %v210, %v242
          %v283 = vsub.f32 %v211, %v242
          %v284 = vsub.f32 %v212, %v249
          %v285 = vsub.f32 %v213, %v249
          %v286 = vsub.f32 %v214, %v256
          %v287 = vsub.f32 %v215, %v256
          %v288 = vsub.f32 %v216, %v263
          %v289 = vsub.f32 %v217, %v263
          %v290 = vsub.f32 %v218, %v270
          %v291 = vsub.f32 %v219, %v270
          %v292 = vsub.f32 %v220, %v277
          %v293 = vsub.f32 %v221, %v277
          %v294 = vmul.f32 %v278, 1.442695
          %v295 = vpow.pop %v294
          %v296 = vmul.f32 %v279, 1.442695
          %v297 = vpow.pop %v296
          %v298 = vmul.f32 %v280, 1.442695
          %v299 = vpow.pop %v298
          %v300 = vmul.f32 %v281, 1.442695
          %v301 = vpow.pop %v300
          %v302 = vmul.f32 %v282, 1.442695
          %v303 = vpow.pop %v302
          %v304 = vmul.f32 %v283, 1.442695
          %v305 = vpow.pop %v304
          %v306 = vmul.f32 %v284, 1.442695
          %v307 = vpow.pop %v306
          %v308 = vmul.f32 %v285, 1.442695
          %v309 = vpow.pop %v308
          %v310 = vmul.f32 %v286, 1.442695
          %v311 = vpow.pop %v310
          %v312 = vmul.f32 %v287, 1.442695
          %v313 = vpow.pop %v312
          %v314 = vmul.f32 %v288, 1.442695
          %v315 = vpow.pop %v314
          %v316 = vmul.f32 %v289, 1.442695
          %v317 = vpow.pop %v316
          %v318 = vmul.f32 %v290, 1.442695
          %v319 = vpow.pop %v318
          %v320 = vmul.f32 %v291, 1.442695
          %v321 = vpow.pop %v320
          %v322 = vmul.f32 %v292, 1.442695
          %v323 = vpow.pop %v322
          %v324 = vmul.f32 %v293, 1.442695
          %v325 = vpow.pop %v324
          %v326 = vadd.f32 %v295, %v297
          %v327 = vrot.slane %v326, 4
          %v328 = vadd.f32 %v326, %v327
          %v329 = vrot.slane %v328, 2
          %v330 = vadd.f32 %v328, %v329
          %v331 = vrot.slane %v330, 1
          %v332 = vadd.f32 %v330, %v331
          %v333 = vadd.f32 %v299, %v301
          %v334 = vrot.slane %v333, 4
          %v335 = vadd.f32 %v333, %v334
          %v336 = vrot.slane %v335, 2
          %v337 = vadd.f32 %v335, %v336
          %v338 = vrot.slane %v337, 1
          %v339 = vadd.f32 %v337, %v338
          %v340 = vadd.f32 %v303, %v305
          %v341 = vrot.slane %v340, 4
          %v342 = vadd.f32 %v340, %v341
          %v343 = vrot.slane %v342, 2
          %v344 = vadd.f32 %v342, %v343
          %v345 = vrot.slane %v344, 1
          %v346 = vadd.f32 %v344, %v345
          %v347 = vadd.f32 %v307, %v309
          %v348 = vrot.slane %v347, 4
          %v349 = vadd.f32 %v347, %v348
          %v350 = vrot.slane %v349, 2
          %v351 = vadd.f32 %v349, %v350
          %v352 = vrot.slane %v351, 1
          %v353 = vadd.f32 %v351, %v352
          %v354 = vadd.f32 %v311, %v313
          %v355 = vrot.slane %v354, 4
          %v356 = vadd.f32 %v354, %v355
          %v357 = vrot.slane %v356, 2
          %v358 = vadd.f32 %v356, %v357
          %v359 = vrot.slane %v358, 1
          %v360 = vadd.f32 %v358, %v359
          %v361 = vadd.f32 %v315, %v317
          %v362 = vrot.slane %v361, 4
          %v363 = vadd.f32 %v361, %v362
          %v364 = vrot.slane %v363, 2
          %v365 = vadd.f32 %v363, %v364
          %v366 = vrot.slane %v365, 1
          %v367 = vadd.f32 %v365, %v366
          %v368 = vadd.f32 %v319, %v321
          %v369 = vrot.slane %v368, 4
          %v370 = vadd.f32 %v368, %v369
          %v371 = vrot.slane %v370, 2
          %v372 = vadd.f32 %v370, %v371
          %v373 = vrot.slane %v372, 1
          %v374 = vadd.f32 %v372, %v373
          %v375 = vadd.f32 %v323, %v325
          %v376 = vrot.slane %v375, 4
          %v377 = vadd.f32 %v375, %v376
          %v378 = vrot.slane %v377, 2
          %v379 = vadd.f32 %v377, %v378
          %v380 = vrot.slane %v379, 1
          %v381 = vadd.f32 %v379, %v380
          %v382 = vlog2.pop %v332
          %v383 = vmul.f32 %v382, 0.6931472
          %v384 = vlog2.pop %v339
          %v385 = vmul.f32 %v384, 0.6931472
          %v386 = vlog2.pop %v346
          %v387 = vmul.f32 %v386, 0.6931472
          %v388 = vlog2.pop %v353
          %v389 = vmul.f32 %v388, 0.6931472
          %v390 = vlog2.pop %v360
          %v391 = vmul.f32 %v390, 0.6931472
          %v392 = vlog2.pop %v367
          %v393 = vmul.f32 %v392, 0.6931472
          %v394 = vlog2.pop %v374
          %v395 = vmul.f32 %v394, 0.6931472
          %v396 = vlog2.pop %v381
          %v397 = vmul.f32 %v396, 0.6931472
          %v398 = vadd.f32 %v383, %v228
          %v399 = vadd.f32 %v385, %v235
          %v400 = vadd.f32 %v387, %v242
          %v401 = vadd.f32 %v389, %v249
          %v402 = vadd.f32 %v391, %v256
          %v403 = vadd.f32 %v393, %v263
          %v404 = vadd.f32 %v395, %v270
          %v405 = vadd.f32 %v397, %v277
          %v406 = vld [vmem:[#allocation8] sm:$0x1]
          %v407 = vlaneseq
          %v408 = vshrl.u32 %v407, 7
          %v409 = vadd.s32 %v408, 8
          %v410 = vlaneseq
          %v411 = vshrl.u32 %v410, 7
          %v412 = vsub.s32 0, %v411
          %v413 = vrot.slane %v406, %v412
          %vm414 = vcmp.eq.s32.totalorder %v408, %v413
          %vm415 = vcmp.eq.s32.totalorder %v409, %v413
          %v416 = vsel %vm414, 1, 0
          %v417 = vsel %vm415, 1, 0
          %v418 = vcvt.s32.f32 %v416
          %v419 = vcvt.s32.f32 %v417
          %v420 = vsub.f32 %v207, %v398
          %v421 = vsub.f32 %v209, %v399
          %v422 = vsub.f32 %v211, %v400
          %v423 = vsub.f32 %v213, %v401
          %v424 = vsub.f32 %v215, %v402
          %v425 = vsub.f32 %v217, %v403
          %v426 = vsub.f32 %v219, %v404
          %v427 = vsub.f32 %v221, %v405
          %v428 = vmul.f32 %v206, %v418
          %v429 = vmul.f32 %v207, %v419
          %v430 = vmul.f32 %v208, %v418
          %v431 = vmul.f32 %v209, %v419
          %v432 = vmul.f32 %v210, %v418
          %v433 = vmul.f32 %v211, %v419
          %v434 = vmul.f32 %v212, %v418
          %v435 = vmul.f32 %v213, %v419
          %v436 = vmul.f32 %v214, %v418
          %v437 = vmul.f32 %v215, %v419
          %v438 = vmul.f32 %v216, %v418
          %v439 = vmul.f32 %v217, %v419
          %v440 = vmul.f32 %v218, %v418
          %v441 = vmul.f32 %v219, %v419
          %v442 = vmul.f32 %v220, %v418
          %v443 = vmul.f32 %v221, %v419
          %v444 = vadd.f32 %v428, %v429
          %v445 = vrot.slane %v444, 4
          %v446 = vadd.f32 %v444, %v445
          %v447 = vrot.slane %v446, 2
          %v448 = vadd.f32 %v446, %v447
          %v449 = vrot.slane %v448, 1
          %v450 = vadd.f32 %v448, %v449
          %v451 = vadd.f32 %v430, %v431
          %v452 = vrot.slane %v451, 4
          %v453 = vadd.f32 %v451, %v452
          %v454 = vrot.slane %v453, 2
          %v455 = vadd.f32 %v453, %v454
          %v456 = vrot.slane %v455, 1
          %v457 = vadd.f32 %v455, %v456
          %v458 = vadd.f32 %v432, %v433
          %v459 = vrot.slane %v458, 4
          %v460 = vadd.f32 %v458, %v459
          %v461 = vrot.slane %v460, 2
          %v462 = vadd.f32 %v460, %v461
          %v463 = vrot.slane %v462, 1
          %v464 = vadd.f32 %v462, %v463
          %v465 = vadd.f32 %v434, %v435
          %v466 = vrot.slane %v465, 4
          %v467 = vadd.f32 %v465, %v466
          %v468 = vrot.slane %v467, 2
          %v469 = vadd.f32 %v467, %v468
          %v470 = vrot.slane %v469, 1
          %v471 = vadd.f32 %v469, %v470
          %v472 = vadd.f32 %v436, %v437
          %v473 = vrot.slane %v472, 4
          %v474 = vadd.f32 %v472, %v473
          %v475 = vrot.slane %v474, 2
          %v476 = vadd.f32 %v474, %v475
          %v477 = vrot.slane %v476, 1
          %v478 = vadd.f32 %v476, %v477
          %v479 = vadd.f32 %v438, %v439
          %v480 = vrot.slane %v479, 4
          %v481 = vadd.f32 %v479, %v480
          %v482 = vrot.slane %v481, 2
          %v483 = vadd.f32 %v481, %v482
          %v484 = vrot.slane %v483, 1
          %v485 = vadd.f32 %v483, %v484
          %v486 = vadd.f32 %v440, %v441
          %v487 = vrot.slane %v486, 4
          %v488 = vadd.f32 %v486, %v487
          %v489 = vrot.slane %v488, 2
          %v490 = vadd.f32 %v488, %v489
          %v491 = vrot.slane %v490, 1
          %v492 = vadd.f32 %v490, %v491
          %v493 = vadd.f32 %v442, %v443
          %v494 = vrot.slane %v493, 4
          %v495 = vadd.f32 %v493, %v494
          %v496 = vrot.slane %v495, 2
          %v497 = vadd.f32 %v495, %v496
          %v498 = vrot.slane %v497, 1
          %v499 = vadd.f32 %v497, %v498
          %v500 = vsub.f32 %v450, %v398
          %v501 = vsub.f32 %v457, %v399
          %v502 = vsub.f32 %v464, %v400
          %v503 = vsub.f32 %v471, %v401
          %v504 = vsub.f32 %v478, %v402
          %v505 = vsub.f32 %v485, %v403
          %v506 = vsub.f32 %v492, %v404
          %v507 = vsub.f32 %v499, %v405
          %v516 = vrot.slane %v421, 7
          %v517 = vrot.slane %v422, 6
          %vm518 = vcmask 1041409
          %v519 = vsel %vm518, %v517, %v516
          %v520 = vrot.slane %v423, 5
          %vm521 = vcmask 1042434
          %v522 = vsel %vm521, %v520, %v519
          %v523 = vrot.slane %v424, 4
          %vm524 = vcmask 1043459
          %v525 = vsel %vm524, %v523, %v522
          %v526 = vrot.slane %v425, 3
          %vm527 = vcmask 1044484
          %v528 = vsel %vm527, %v526, %v525
          %v529 = vrot.slane %v426, 2
          %vm530 = vcmask 1045509
          %v531 = vsel %vm530, %v529, %v528
          %v532 = vrot.slane %v427, 1
          %vm533 = vcmask 1046534
          %v534 = vsel %vm533, %v532, %v531
          %537 = vst [vmem:[#allocation2 - $0x7] sm:$0x80] %v420
          %538 = vst [vmem:[#allocation2 + $0x1] sm:$0x7f] %v534
          %v547 = vsel %vm518, %v501, %v500
          %v548 = vsel %vm521, %v502, %v547
          %v549 = vsel %vm524, %v503, %v548
          %v550 = vsel %vm527, %v504, %v549
          %v551 = vsel %vm530, %v505, %v550
          %v552 = vsel %vm533, %v506, %v551
          %vm553 = vcmask 1047559
          %v554 = vsel %vm553, %v507, %v552
          %556 = vst [vmem:[#allocation3] sm:$0xff] %v554
        $region40: #{tpu_custom_call.1} parent=27 // pred_fallthru
          _
        %p557 = scmp.ge.s32.totalorder %s23, 1
        %p558 = scmp.lt.s32.totalorder %s23, 4
        %p559 = pnand %p557, %p558
        %p560 = pneg %p559
        // Predicated region
        $region41: #{tpu_custom_call.1} parent=27 // pred_check
          _
        $region42: #{tpu_custom_call.1} parent=27 // pred_check_branch
          %562 = sbr.rel (%p559) target = $region44
        $region43: #{tpu_custom_call.1} parent=27 // pred_region
          %s563 = ssub.s32 %s23, 1
          %p564 = scmp.lt.s32.totalorder %s563, 0
          %s565 = ssub.s32 0, %s563
          %s566 = scalar_select %p564, %s565, %s563
          %s567 = sand.u32 %s566, 1
          %s568 = ssub.s32 0, %s567
          %s569 = scalar_select %p564, %s568, %s567
          %s570 = smul.u32 %s569, 8
          %v571 = vld [vmem:[#allocation4] sm:$0x7]
          %s572 = scalar_lea.vmem [#allocation2], %s570
          %v573 = vld [vmem:[%s572] sm:$0x1]
          %s574 = scalar_lea.vmem [#allocation3], %s570
          %v575 = vld [vmem:[%s574] sm:$0x1]
          %v577 = vrot.slane %v575, 7
          %v580 = vrot.slane %v573, 6
          %vm582 = vcmask 1040384
          %v583 = vsel %vm582, %v573, %v577
          %vm584 = vcmask 1041408
          %v585 = vsel %vm584, %v583, %v580
          %v587 = vrot.slane %v571, 7
          %v589 = vsel %vm582, -1e+30, %v587
          %v590 = vmax.f32 %v571, %v589
          %v591 = vsub.f32 %v571, %v589
          %v592 = vand.u32 2147483647, %v591
          %v593 = vsub.f32 0.0, %v592
          %v594 = vmul.f32 %v593, 1.442695
          %v595 = vpow.pop %v594
          %v596 = vadd.f32 %v595, 1.0
          %v597 = vlog2.pop %v596
          %v598 = vmul.f32 %v597, 0.6931472
          %v599 = vadd.f32 %v590, %v598
          %v600 = vadd.f32 %v599, %v585
          %s601 = sadd.s32 %s570, 1
          %s602 = scalar_lea.vmem [#allocation2], %s601
          %v603 = vld [vmem:[%s602] sm:$0x1]
          %s604 = scalar_lea.vmem [#allocation3], %s601
          %v605 = vld [vmem:[%s604] sm:$0x1]
          %v607 = vrot.slane %v605, 7
          %v610 = vrot.slane %v603, 6
          %v612 = vsel %vm582, %v603, %v607
          %v613 = vsel %vm584, %v612, %v610
          %v615 = vrot.slane %v600, 7
          %v617 = vsel %vm582, -1e+30, %v615
          %v618 = vmax.f32 %v600, %v617
          %v619 = vsub.f32 %v600, %v617
          %v620 = vand.u32 2147483647, %v619
          %v621 = vsub.f32 0.0, %v620
          %v622 = vmul.f32 %v621, 1.442695
          %v623 = vpow.pop %v622
          %v624 = vadd.f32 %v623, 1.0
          %v625 = vlog2.pop %v624
          %v626 = vmul.f32 %v625, 0.6931472
          %v627 = vadd.f32 %v618, %v626
          %v628 = vadd.f32 %v627, %v613
          %s629 = sadd.s32 %s570, 2
          %s630 = scalar_lea.vmem [#allocation2], %s629
          %v631 = vld [vmem:[%s630] sm:$0x1]
          %s632 = scalar_lea.vmem [#allocation3], %s629
          %v633 = vld [vmem:[%s632] sm:$0x1]
          %v635 = vrot.slane %v633, 7
          %v638 = vrot.slane %v631, 6
          %v640 = vsel %vm582, %v631, %v635
          %v641 = vsel %vm584, %v640, %v638
          %v643 = vrot.slane %v628, 7
          %v645 = vsel %vm582, -1e+30, %v643
          %v646 = vmax.f32 %v628, %v645
          %v647 = vsub.f32 %v628, %v645
          %v648 = vand.u32 2147483647, %v647
          %v649 = vsub.f32 0.0, %v648
          %v650 = vmul.f32 %v649, 1.442695
          %v651 = vpow.pop %v650
          %v652 = vadd.f32 %v651, 1.0
          %v653 = vlog2.pop %v652
          %v654 = vmul.f32 %v653, 0.6931472
          %v655 = vadd.f32 %v646, %v654
          %v656 = vadd.f32 %v655, %v641
          %s657 = sadd.s32 %s570, 3
          %s658 = scalar_lea.vmem [#allocation2], %s657
          %v659 = vld [vmem:[%s658] sm:$0x1]
          %s660 = scalar_lea.vmem [#allocation3], %s657
          %v661 = vld [vmem:[%s660] sm:$0x1]
          %v663 = vrot.slane %v661, 7
          %v666 = vrot.slane %v659, 6
          %v668 = vsel %vm582, %v659, %v663
          %v669 = vsel %vm584, %v668, %v666
          %v671 = vrot.slane %v656, 7
          %v673 = vsel %vm582, -1e+30, %v671
          %v674 = vmax.f32 %v656, %v673
          %v675 = vsub.f32 %v656, %v673
          %v676 = vand.u32 2147483647, %v675
          %v677 = vsub.f32 0.0, %v676
          %v678 = vmul.f32 %v677, 1.442695
          %v679 = vpow.pop %v678
          %v680 = vadd.f32 %v679, 1.0
          %v681 = vlog2.pop %v680
          %v682 = vmul.f32 %v681, 0.6931472
          %v683 = vadd.f32 %v674, %v682
          %v684 = vadd.f32 %v683, %v669
          %s685 = sadd.s32 %s570, 4
          %s686 = scalar_lea.vmem [#allocation2], %s685
          %v687 = vld [vmem:[%s686] sm:$0x1]
          %s688 = scalar_lea.vmem [#allocation3], %s685
          %v689 = vld [vmem:[%s688] sm:$0x1]
          %v691 = vrot.slane %v689, 7
          %v694 = vrot.slane %v687, 6
          %v696 = vsel %vm582, %v687, %v691
          %v697 = vsel %vm584, %v696, %v694
          %v699 = vrot.slane %v684, 7
          %v701 = vsel %vm582, -1e+30, %v699
          %v702 = vmax.f32 %v684, %v701
          %v703 = vsub.f32 %v684, %v701
          %v704 = vand.u32 2147483647, %v703
          %v705 = vsub.f32 0.0, %v704
          %v706 = vmul.f32 %v705, 1.442695
          %v707 = vpow.pop %v706
          %v708 = vadd.f32 %v707, 1.0
          %v709 = vlog2.pop %v708
          %v710 = vmul.f32 %v709, 0.6931472
          %v711 = vadd.f32 %v702, %v710
          %v712 = vadd.f32 %v711, %v697
          %s713 = sadd.s32 %s570, 5
          %s714 = scalar_lea.vmem [#allocation2], %s713
          %v715 = vld [vmem:[%s714] sm:$0x1]
          %s716 = scalar_lea.vmem [#allocation3], %s713
          %v717 = vld [vmem:[%s716] sm:$0x1]
          %v719 = vrot.slane %v717, 7
          %v722 = vrot.slane %v715, 6
          %v724 = vsel %vm582, %v715, %v719
          %v725 = vsel %vm584, %v724, %v722
          %v727 = vrot.slane %v712, 7
          %v729 = vsel %vm582, -1e+30, %v727
          %v730 = vmax.f32 %v712, %v729
          %v731 = vsub.f32 %v712, %v729
          %v732 = vand.u32 2147483647, %v731
          %v733 = vsub.f32 0.0, %v732
          %v734 = vmul.f32 %v733, 1.442695
          %v735 = vpow.pop %v734
          %v736 = vadd.f32 %v735, 1.0
          %v737 = vlog2.pop %v736
          %v738 = vmul.f32 %v737, 0.6931472
          %v739 = vadd.f32 %v730, %v738
          %v740 = vadd.f32 %v739, %v725
          %s741 = sadd.s32 %s570, 6
          %s742 = scalar_lea.vmem [#allocation2], %s741
          %v743 = vld [vmem:[%s742] sm:$0x1]
          %s744 = scalar_lea.vmem [#allocation3], %s741
          %v745 = vld [vmem:[%s744] sm:$0x1]
          %v747 = vrot.slane %v745, 7
          %v750 = vrot.slane %v743, 6
          %v752 = vsel %vm582, %v743, %v747
          %v753 = vsel %vm584, %v752, %v750
          %v755 = vrot.slane %v740, 7
          %v757 = vsel %vm582, -1e+30, %v755
          %v758 = vmax.f32 %v740, %v757
          %v759 = vsub.f32 %v740, %v757
          %v760 = vand.u32 2147483647, %v759
          %v761 = vsub.f32 0.0, %v760
          %v762 = vmul.f32 %v761, 1.442695
          %v763 = vpow.pop %v762
          %v764 = vadd.f32 %v763, 1.0
          %v765 = vlog2.pop %v764
          %v766 = vmul.f32 %v765, 0.6931472
          %v767 = vadd.f32 %v758, %v766
          %v768 = vadd.f32 %v767, %v753
          %s769 = sadd.s32 %s570, 7
          %s770 = scalar_lea.vmem [#allocation2], %s769
          %v771 = vld [vmem:[%s770] sm:$0x1]
          %s772 = scalar_lea.vmem [#allocation3], %s769
          %v773 = vld [vmem:[%s772] sm:$0x1]
          %v775 = vrot.slane %v773, 7
          %v778 = vrot.slane %v771, 6
          %v780 = vsel %vm582, %v771, %v775
          %v781 = vsel %vm584, %v780, %v778
          %v783 = vrot.slane %v768, 7
          %v785 = vsel %vm582, -1e+30, %v783
          %v786 = vmax.f32 %v768, %v785
          %v787 = vsub.f32 %v768, %v785
          %v788 = vand.u32 2147483647, %v787
          %v789 = vsub.f32 0.0, %v788
          %v790 = vmul.f32 %v789, 1.442695
          %v791 = vpow.pop %v790
          %v792 = vadd.f32 %v791, 1.0
          %v793 = vlog2.pop %v792
          %v794 = vmul.f32 %v793, 0.6931472
          %v795 = vadd.f32 %v786, %v794
          %v796 = vadd.f32 %v795, %v781
          %797 = vst [vmem:[#allocation4] sm:$0x7] %v796
          %p798 = scmp.lt.s32.totalorder %s23, 0
          %s799 = ssub.s32 0, %s23
          %s800 = scalar_select %p798, %s799, %s23
          %s801 = sand.u32 %s800, 1
          %s802 = ssub.s32 0, %s801
          %s803 = scalar_select %p798, %s802, %s801
          %s804 = smul.u32 %s803, 8
          %v805 = vld [vmem:[%s177] sm:$0xff]
          %v806 = vld [vmem:[%s177 + $0x8] sm:$0xff]
          %v807 = vld [vmem:[%s177 + $0x10] sm:$0xff]
          %v808 = vld [vmem:[%s177 + $0x18] sm:$0xff]
          %v809 = vld [vmem:[%s177 + $0x20] sm:$0xff]
          %v810 = vld [vmem:[%s177 + $0x28] sm:$0xff]
          %v811 = vld [vmem:[%s177 + $0x30] sm:$0xff]
          %v812 = vld [vmem:[%s177 + $0x38] sm:$0xff]
          %v813 = vld [vmem:[%s177 + $0x40] sm:$0xff]
          %v814 = vld [vmem:[%s177 + $0x48] sm:$0xff]
          %v815 = vld [vmem:[%s177 + $0x50] sm:$0xff]
          %v816 = vld [vmem:[%s177 + $0x58] sm:$0xff]
          %v817 = vld [vmem:[%s177 + $0x60] sm:$0xff]
          %v818 = vld [vmem:[%s177 + $0x68] sm:$0xff]
          %v819 = vld [vmem:[%s177 + $0x70] sm:$0xff]
          %v820 = vld [vmem:[%s177 + $0x78] sm:$0xff]
          %v821 = vmax.f32 %v805, %v806
          %v822 = vrot.slane %v821, 4
          %v823 = vmax.f32 %v821, %v822
          %v824 = vrot.slane %v823, 2
          %v825 = vmax.f32 %v823, %v824
          %v826 = vrot.slane %v825, 1
          %v827 = vmax.f32 %v825, %v826
          %v828 = vmax.f32 %v807, %v808
          %v829 = vrot.slane %v828, 4
          %v830 = vmax.f32 %v828, %v829
          %v831 = vrot.slane %v830, 2
          %v832 = vmax.f32 %v830, %v831
          %v833 = vrot.slane %v832, 1
          %v834 = vmax.f32 %v832, %v833
          %v835 = vmax.f32 %v809, %v810
          %v836 = vrot.slane %v835, 4
          %v837 = vmax.f32 %v835, %v836
          %v838 = vrot.slane %v837, 2
          %v839 = vmax.f32 %v837, %v838
          %v840 = vrot.slane %v839, 1
          %v841 = vmax.f32 %v839, %v840
          %v842 = vmax.f32 %v811, %v812
          %v843 = vrot.slane %v842, 4
          %v844 = vmax.f32 %v842, %v843
          %v845 = vrot.slane %v844, 2
          %v846 = vmax.f32 %v844, %v845
          %v847 = vrot.slane %v846, 1
          %v848 = vmax.f32 %v846, %v847
          %v849 = vmax.f32 %v813, %v814
          %v850 = vrot.slane %v849, 4
          %v851 = vmax.f32 %v849, %v850
          %v852 = vrot.slane %v851, 2
          %v853 = vmax.f32 %v851, %v852
          %v854 = vrot.slane %v853, 1
          %v855 = vmax.f32 %v853, %v854
          %v856 = vmax.f32 %v815, %v816
          %v857 = vrot.slane %v856, 4
          %v858 = vmax.f32 %v856, %v857
          %v859 = vrot.slane %v858, 2
          %v860 = vmax.f32 %v858, %v859
          %v861 = vrot.slane %v860, 1
          %v862 = vmax.f32 %v860, %v861
          %v863 = vmax.f32 %v817, %v818
          %v864 = vrot.slane %v863, 4
          %v865 = vmax.f32 %v863, %v864
          %v866 = vrot.slane %v865, 2
          %v867 = vmax.f32 %v865, %v866
          %v868 = vrot.slane %v867, 1
          %v869 = vmax.f32 %v867, %v868
          %v870 = vmax.f32 %v819, %v820
          %v871 = vrot.slane %v870, 4
          %v872 = vmax.f32 %v870, %v871
          %v873 = vrot.slane %v872, 2
          %v874 = vmax.f32 %v872, %v873
          %v875 = vrot.slane %v874, 1
          %v876 = vmax.f32 %v874, %v875
          %v877 = vsub.f32 %v805, %v827
          %v878 = vsub.f32 %v806, %v827
          %v879 = vsub.f32 %v807, %v834
          %v880 = vsub.f32 %v808, %v834
          %v881 = vsub.f32 %v809, %v841
          %v882 = vsub.f32 %v810, %v841
          %v883 = vsub.f32 %v811, %v848
          %v884 = vsub.f32 %v812, %v848
          %v885 = vsub.f32 %v813, %v855
          %v886 = vsub.f32 %v814, %v855
          %v887 = vsub.f32 %v815, %v862
          %v888 = vsub.f32 %v816, %v862
          %v889 = vsub.f32 %v817, %v869
          %v890 = vsub.f32 %v818, %v869
          %v891 = vsub.f32 %v819, %v876
          %v892 = vsub.f32 %v820, %v876
          %v893 = vmul.f32 %v877, 1.442695
          %v894 = vpow.pop %v893
          %v895 = vmul.f32 %v878, 1.442695
          %v896 = vpow.pop %v895
          %v897 = vmul.f32 %v879, 1.442695
          %v898 = vpow.pop %v897
          %v899 = vmul.f32 %v880, 1.442695
          %v900 = vpow.pop %v899
          %v901 = vmul.f32 %v881, 1.442695
          %v902 = vpow.pop %v901
          %v903 = vmul.f32 %v882, 1.442695
          %v904 = vpow.pop %v903
          %v905 = vmul.f32 %v883, 1.442695
          %v906 = vpow.pop %v905
          %v907 = vmul.f32 %v884, 1.442695
          %v908 = vpow.pop %v907
          %v909 = vmul.f32 %v885, 1.442695
          %v910 = vpow.pop %v909
          %v911 = vmul.f32 %v886, 1.442695
          %v912 = vpow.pop %v911
          %v913 = vmul.f32 %v887, 1.442695
          %v914 = vpow.pop %v913
          %v915 = vmul.f32 %v888, 1.442695
          %v916 = vpow.pop %v915
          %v917 = vmul.f32 %v889, 1.442695
          %v918 = vpow.pop %v917
          %v919 = vmul.f32 %v890, 1.442695
          %v920 = vpow.pop %v919
          %v921 = vmul.f32 %v891, 1.442695
          %v922 = vpow.pop %v921
          %v923 = vmul.f32 %v892, 1.442695
          %v924 = vpow.pop %v923
          %v925 = vadd.f32 %v894, %v896
          %v926 = vrot.slane %v925, 4
          %v927 = vadd.f32 %v925, %v926
          %v928 = vrot.slane %v927, 2
          %v929 = vadd.f32 %v927, %v928
          %v930 = vrot.slane %v929, 1
          %v931 = vadd.f32 %v929, %v930
          %v932 = vadd.f32 %v898, %v900
          %v933 = vrot.slane %v932, 4
          %v934 = vadd.f32 %v932, %v933
          %v935 = vrot.slane %v934, 2
          %v936 = vadd.f32 %v934, %v935
          %v937 = vrot.slane %v936, 1
          %v938 = vadd.f32 %v936, %v937
          %v939 = vadd.f32 %v902, %v904
          %v940 = vrot.slane %v939, 4
          %v941 = vadd.f32 %v939, %v940
          %v942 = vrot.slane %v941, 2
          %v943 = vadd.f32 %v941, %v942
          %v944 = vrot.slane %v943, 1
          %v945 = vadd.f32 %v943, %v944
          %v946 = vadd.f32 %v906, %v908
          %v947 = vrot.slane %v946, 4
          %v948 = vadd.f32 %v946, %v947
          %v949 = vrot.slane %v948, 2
          %v950 = vadd.f32 %v948, %v949
          %v951 = vrot.slane %v950, 1
          %v952 = vadd.f32 %v950, %v951
          %v953 = vadd.f32 %v910, %v912
          %v954 = vrot.slane %v953, 4
          %v955 = vadd.f32 %v953, %v954
          %v956 = vrot.slane %v955, 2
          %v957 = vadd.f32 %v955, %v956
          %v958 = vrot.slane %v957, 1
          %v959 = vadd.f32 %v957, %v958
          %v960 = vadd.f32 %v914, %v916
          %v961 = vrot.slane %v960, 4
          %v962 = vadd.f32 %v960, %v961
          %v963 = vrot.slane %v962, 2
          %v964 = vadd.f32 %v962, %v963
          %v965 = vrot.slane %v964, 1
          %v966 = vadd.f32 %v964, %v965
          %v967 = vadd.f32 %v918, %v920
          %v968 = vrot.slane %v967, 4
          %v969 = vadd.f32 %v967, %v968
          %v970 = vrot.slane %v969, 2
          %v971 = vadd.f32 %v969, %v970
          %v972 = vrot.slane %v971, 1
          %v973 = vadd.f32 %v971, %v972
          %v974 = vadd.f32 %v922, %v924
          %v975 = vrot.slane %v974, 4
          %v976 = vadd.f32 %v974, %v975
          %v977 = vrot.slane %v976, 2
          %v978 = vadd.f32 %v976, %v977
          %v979 = vrot.slane %v978, 1
          %v980 = vadd.f32 %v978, %v979
          %v981 = vlog2.pop %v931
          %v982 = vmul.f32 %v981, 0.6931472
          %v983 = vlog2.pop %v938
          %v984 = vmul.f32 %v983, 0.6931472
          %v985 = vlog2.pop %v945
          %v986 = vmul.f32 %v985, 0.6931472
          %v987 = vlog2.pop %v952
          %v988 = vmul.f32 %v987, 0.6931472
          %v989 = vlog2.pop %v959
          %v990 = vmul.f32 %v989, 0.6931472
          %v991 = vlog2.pop %v966
          %v992 = vmul.f32 %v991, 0.6931472
          %v993 = vlog2.pop %v973
          %v994 = vmul.f32 %v993, 0.6931472
          %v995 = vlog2.pop %v980
          %v996 = vmul.f32 %v995, 0.6931472
          %v997 = vadd.f32 %v982, %v827
          %v998 = vadd.f32 %v984, %v834
          %v999 = vadd.f32 %v986, %v841
          %v1000 = vadd.f32 %v988, %v848
          %v1001 = vadd.f32 %v990, %v855
          %v1002 = vadd.f32 %v992, %v862
          %v1003 = vadd.f32 %v994, %v869
          %v1004 = vadd.f32 %v996, %v876
          %v1005 = vld [vmem:[#allocation8] sm:$0x1]
          %v1006 = vlaneseq
          %v1007 = vshrl.u32 %v1006, 7
          %v1008 = vadd.s32 %v1007, 8
          %v1009 = vlaneseq
          %v1010 = vshrl.u32 %v1009, 7
          %v1011 = vsub.s32 0, %v1010
          %v1012 = vrot.slane %v1005, %v1011
          %vm1013 = vcmp.eq.s32.totalorder %v1007, %v1012
          %vm1014 = vcmp.eq.s32.totalorder %v1008, %v1012
          %v1015 = vsel %vm1013, 1, 0
          %v1016 = vsel %vm1014, 1, 0
          %v1017 = vcvt.s32.f32 %v1015
          %v1018 = vcvt.s32.f32 %v1016
          %v1019 = vsub.f32 %v806, %v997
          %v1020 = vsub.f32 %v808, %v998
          %v1021 = vsub.f32 %v810, %v999
          %v1022 = vsub.f32 %v812, %v1000
          %v1023 = vsub.f32 %v814, %v1001
          %v1024 = vsub.f32 %v816, %v1002
          %v1025 = vsub.f32 %v818, %v1003
          %v1026 = vsub.f32 %v820, %v1004
          %v1027 = vmul.f32 %v805, %v1017
          %v1028 = vmul.f32 %v806, %v1018
          %v1029 = vmul.f32 %v807, %v1017
          %v1030 = vmul.f32 %v808, %v1018
          %v1031 = vmul.f32 %v809, %v1017
          %v1032 = vmul.f32 %v810, %v1018
          %v1033 = vmul.f32 %v811, %v1017
          %v1034 = vmul.f32 %v812, %v1018
          %v1035 = vmul.f32 %v813, %v1017
          %v1036 = vmul.f32 %v814, %v1018
          %v1037 = vmul.f32 %v815, %v1017
          %v1038 = vmul.f32 %v816, %v1018
          %v1039 = vmul.f32 %v817, %v1017
          %v1040 = vmul.f32 %v818, %v1018
          %v1041 = vmul.f32 %v819, %v1017
          %v1042 = vmul.f32 %v820, %v1018
          %v1043 = vadd.f32 %v1027, %v1028
          %v1044 = vrot.slane %v1043, 4
          %v1045 = vadd.f32 %v1043, %v1044
          %v1046 = vrot.slane %v1045, 2
          %v1047 = vadd.f32 %v1045, %v1046
          %v1048 = vrot.slane %v1047, 1
          %v1049 = vadd.f32 %v1047, %v1048
          %v1050 = vadd.f32 %v1029, %v1030
          %v1051 = vrot.slane %v1050, 4
          %v1052 = vadd.f32 %v1050, %v1051
          %v1053 = vrot.slane %v1052, 2
          %v1054 = vadd.f32 %v1052, %v1053
          %v1055 = vrot.slane %v1054, 1
          %v1056 = vadd.f32 %v1054, %v1055
          %v1057 = vadd.f32 %v1031, %v1032
          %v1058 = vrot.slane %v1057, 4
          %v1059 = vadd.f32 %v1057, %v1058
          %v1060 = vrot.slane %v1059, 2
          %v1061 = vadd.f32 %v1059, %v1060
          %v1062 = vrot.slane %v1061, 1
          %v1063 = vadd.f32 %v1061, %v1062
          %v1064 = vadd.f32 %v1033, %v1034
          %v1065 = vrot.slane %v1064, 4
          %v1066 = vadd.f32 %v1064, %v1065
          %v1067 = vrot.slane %v1066, 2
          %v1068 = vadd.f32 %v1066, %v1067
          %v1069 = vrot.slane %v1068, 1
          %v1070 = vadd.f32 %v1068, %v1069
          %v1071 = vadd.f32 %v1035, %v1036
          %v1072 = vrot.slane %v1071, 4
          %v1073 = vadd.f32 %v1071, %v1072
          %v1074 = vrot.slane %v1073, 2
          %v1075 = vadd.f32 %v1073, %v1074
          %v1076 = vrot.slane %v1075, 1
          %v1077 = vadd.f32 %v1075, %v1076
          %v1078 = vadd.f32 %v1037, %v1038
          %v1079 = vrot.slane %v1078, 4
          %v1080 = vadd.f32 %v1078, %v1079
          %v1081 = vrot.slane %v1080, 2
          %v1082 = vadd.f32 %v1080, %v1081
          %v1083 = vrot.slane %v1082, 1
          %v1084 = vadd.f32 %v1082, %v1083
          %v1085 = vadd.f32 %v1039, %v1040
          %v1086 = vrot.slane %v1085, 4
          %v1087 = vadd.f32 %v1085, %v1086
          %v1088 = vrot.slane %v1087, 2
          %v1089 = vadd.f32 %v1087, %v1088
          %v1090 = vrot.slane %v1089, 1
          %v1091 = vadd.f32 %v1089, %v1090
          %v1092 = vadd.f32 %v1041, %v1042
          %v1093 = vrot.slane %v1092, 4
          %v1094 = vadd.f32 %v1092, %v1093
          %v1095 = vrot.slane %v1094, 2
          %v1096 = vadd.f32 %v1094, %v1095
          %v1097 = vrot.slane %v1096, 1
          %v1098 = vadd.f32 %v1096, %v1097
          %v1099 = vsub.f32 %v1049, %v997
          %v1100 = vsub.f32 %v1056, %v998
          %v1101 = vsub.f32 %v1063, %v999
          %v1102 = vsub.f32 %v1070, %v1000
          %v1103 = vsub.f32 %v1077, %v1001
          %v1104 = vsub.f32 %v1084, %v1002
          %v1105 = vsub.f32 %v1091, %v1003
          %v1106 = vsub.f32 %v1098, %v1004
          %v1115 = vrot.slane %v1020, 7
          %v1116 = vrot.slane %v1021, 6
          %vm1117 = vcmask 1041409
          %v1118 = vsel %vm1117, %v1116, %v1115
          %v1119 = vrot.slane %v1022, 5
          %vm1120 = vcmask 1042434
          %v1121 = vsel %vm1120, %v1119, %v1118
          %v1122 = vrot.slane %v1023, 4
          %vm1123 = vcmask 1043459
          %v1124 = vsel %vm1123, %v1122, %v1121
          %v1125 = vrot.slane %v1024, 3
          %vm1126 = vcmask 1044484
          %v1127 = vsel %vm1126, %v1125, %v1124
          %v1128 = vrot.slane %v1025, 2
          %vm1129 = vcmask 1045509
          %v1130 = vsel %vm1129, %v1128, %v1127
          %v1131 = vrot.slane %v1026, 1
          %vm1132 = vcmask 1046534
          %v1133 = vsel %vm1132, %v1131, %v1130
          %s1136 = scalar_lea.vmem [#allocation2], %s804
          %1137 = vst [vmem:[%s1136 - $0x7] sm:$0x80] %v1019
          %1138 = vst [vmem:[%s1136 + $0x1] sm:$0x7f] %v1133
          %v1147 = vsel %vm1117, %v1100, %v1099
          %v1148 = vsel %vm1120, %v1101, %v1147
          %v1149 = vsel %vm1123, %v1102, %v1148
          %v1150 = vsel %vm1126, %v1103, %v1149
          %v1151 = vsel %vm1129, %v1104, %v1150
          %v1152 = vsel %vm1132, %v1105, %v1151
          %vm1153 = vcmask 1047559
          %v1154 = vsel %vm1153, %v1106, %v1152
          %s1156 = scalar_lea.vmem [#allocation3], %s804
          %1157 = vst [vmem:[%s1156] sm:$0xff] %v1154
        $region44: #{tpu_custom_call.1} parent=27 // pred_fallthru
          _
        %p1158 = scmp.eq.s32.totalorder %s23, 4
        // Predicated region
        $region45: #{tpu_custom_call.1} parent=27 // pred_check
          %p1159 = pneg %p1158
        $region46: #{tpu_custom_call.1} parent=27 // pred_check_branch
          %1161 = sbr.rel (%p1159) target = $region48
        $region47: #{tpu_custom_call.1} parent=27 // pred_region
          %v1162 = vld [vmem:[#allocation4] sm:$0x7]
          %v1163 = vld [vmem:[#allocation2 + $0x8] sm:$0x1]
          %v1164 = vld [vmem:[#allocation3 + $0x8] sm:$0x1]
          %v1166 = vrot.slane %v1164, 7
          %v1169 = vrot.slane %v1163, 6
          %vm1171 = vcmask 1040384
          %v1172 = vsel %vm1171, %v1163, %v1166
          %vm1173 = vcmask 1041408
          %v1174 = vsel %vm1173, %v1172, %v1169
          %v1176 = vrot.slane %v1162, 7
          %v1178 = vsel %vm1171, -1e+30, %v1176
          %v1179 = vmax.f32 %v1162, %v1178
          %v1180 = vsub.f32 %v1162, %v1178
          %v1181 = vand.u32 2147483647, %v1180
          %v1182 = vsub.f32 0.0, %v1181
          %v1183 = vmul.f32 %v1182, 1.442695
          %v1184 = vpow.pop %v1183
          %v1185 = vadd.f32 %v1184, 1.0
          %v1186 = vlog2.pop %v1185
          %v1187 = vmul.f32 %v1186, 0.6931472
          %v1188 = vadd.f32 %v1179, %v1187
          %v1189 = vadd.f32 %v1188, %v1174
          %v1190 = vld [vmem:[#allocation2 + $0x9] sm:$0x1]
          %v1191 = vld [vmem:[#allocation3 + $0x9] sm:$0x1]
          %v1193 = vrot.slane %v1191, 7
          %v1196 = vrot.slane %v1190, 6
          %v1198 = vsel %vm1171, %v1190, %v1193
          %v1199 = vsel %vm1173, %v1198, %v1196
          %v1201 = vrot.slane %v1189, 7
          %v1203 = vsel %vm1171, -1e+30, %v1201
          %v1204 = vmax.f32 %v1189, %v1203
          %v1205 = vsub.f32 %v1189, %v1203
          %v1206 = vand.u32 2147483647, %v1205
          %v1207 = vsub.f32 0.0, %v1206
          %v1208 = vmul.f32 %v1207, 1.442695
          %v1209 = vpow.pop %v1208
          %v1210 = vadd.f32 %v1209, 1.0
          %v1211 = vlog2.pop %v1210
          %v1212 = vmul.f32 %v1211, 0.6931472
          %v1213 = vadd.f32 %v1204, %v1212
          %v1214 = vadd.f32 %v1213, %v1199
          %v1215 = vld [vmem:[#allocation2 + $0xa] sm:$0x1]
          %v1216 = vld [vmem:[#allocation3 + $0xa] sm:$0x1]
          %v1218 = vrot.slane %v1216, 7
          %v1221 = vrot.slane %v1215, 6
          %v1223 = vsel %vm1171, %v1215, %v1218
          %v1224 = vsel %vm1173, %v1223, %v1221
          %v1226 = vrot.slane %v1214, 7
          %v1228 = vsel %vm1171, -1e+30, %v1226
          %v1229 = vmax.f32 %v1214, %v1228
          %v1230 = vsub.f32 %v1214, %v1228
          %v1231 = vand.u32 2147483647, %v1230
          %v1232 = vsub.f32 0.0, %v1231
          %v1233 = vmul.f32 %v1232, 1.442695
          %v1234 = vpow.pop %v1233
          %v1235 = vadd.f32 %v1234, 1.0
          %v1236 = vlog2.pop %v1235
          %v1237 = vmul.f32 %v1236, 0.6931472
          %v1238 = vadd.f32 %v1229, %v1237
          %v1239 = vadd.f32 %v1238, %v1224
          %v1240 = vld [vmem:[#allocation2 + $0xb] sm:$0x1]
          %v1241 = vld [vmem:[#allocation3 + $0xb] sm:$0x1]
          %v1243 = vrot.slane %v1241, 7
          %v1246 = vrot.slane %v1240, 6
          %v1248 = vsel %vm1171, %v1240, %v1243
          %v1249 = vsel %vm1173, %v1248, %v1246
          %v1251 = vrot.slane %v1239, 7
          %v1253 = vsel %vm1171, -1e+30, %v1251
          %v1254 = vmax.f32 %v1239, %v1253
          %v1255 = vsub.f32 %v1239, %v1253
          %v1256 = vand.u32 2147483647, %v1255
          %v1257 = vsub.f32 0.0, %v1256
          %v1258 = vmul.f32 %v1257, 1.442695
          %v1259 = vpow.pop %v1258
          %v1260 = vadd.f32 %v1259, 1.0
          %v1261 = vlog2.pop %v1260
          %v1262 = vmul.f32 %v1261, 0.6931472
          %v1263 = vadd.f32 %v1254, %v1262
          %v1264 = vadd.f32 %v1263, %v1249
          %1265 = vst [vmem:[#allocation4] sm:$0x7] %v1264
          %v1267 = vrot.slane %v1264, 1
          %v1269 = vmax.f32 %v1264, %v1267
          %v1270 = vsub.f32 %v1264, %v1267
          %v1271 = vand.u32 2147483647, %v1270
          %v1272 = vsub.f32 0.0, %v1271
          %v1273 = vmul.f32 %v1272, 1.442695
          %v1274 = vpow.pop %v1273
          %v1275 = vadd.f32 %v1274, 1.0
          %v1276 = vlog2.pop %v1275
          %v1277 = vmul.f32 %v1276, 0.6931472
          %v1278 = vadd.f32 %v1269, %v1277
          %v1279 = vsub.f32 0.0, %v1278
          %1280 = vst [vmem:[#allocation10 - $0x1] sm:$0x2] %v1279
        $region48: #{tpu_custom_call.1} parent=27 // pred_fallthru
          _
        // Predicated region
        $region49: #{tpu_custom_call.1} parent=27 // pred_check
          %p1281 = pneg %p106
        $region50: #{tpu_custom_call.1} parent=27 // pred_check_branch
          %1283 = sbr.rel (%p1281) target = $region52
        $region51: #{tpu_custom_call.1} parent=27 // pred_region
          %s1285 = ssub.s32 16, 16
          %1286 = vsyncadd [#allocation7], %s1285
          %s1287 = smul.addr %s22, 16
          %s1288 = scalar_lea.hbm %s2, %s1287
          %s1290 = sshll.u32 [#allocation10], 4
          %s1291 = int_to_ptr.vmem [resolvable:$true] %s1290
          %1293 = dma.vmem_to_hbm [thread:$0]  %s1291, 16, %s1288, [#allocation7]
        $region52: #{tpu_custom_call.1} parent=27 // pred_fallthru
          _
        // Predicated region
        $region53: #{tpu_custom_call.1} parent=27 // pred_check
          %p1294 = pneg %p106
        $region54: #{tpu_custom_call.1} parent=27 // pred_check_branch
          %1296 = sbr.rel (%p1294) target = $region56
        $region55: #{tpu_custom_call.1} parent=27 // pred_region
          %1297 = dma.done [#allocation7], 16
        $region56: #{tpu_custom_call.1} parent=27 // pred_fallthru
          _
      $region28: #{tpu_custom_call.1} parent=5 // pred_fallthru
        _
      %p1298 = scmp.le.s32.totalorder 2, %s13
      // Predicated region
      $region57: #{tpu_custom_call.1} parent=5 // pred_check
        %p1299 = pneg %p1298
      $region58: #{tpu_custom_call.1} parent=5 // pred_check_branch
        %1301 = sbr.rel (%p1299) target = $region60
      $region59: #{tpu_custom_call.1} parent=5 // pred_region
        %s1302 = ssub.s32 %s13, 2
      $region60: #{tpu_custom_call.1} parent=5 // pred_fallthru
        _
    $region6: #{tpu_custom_call.1} parent=1 // loop_footer
      %s17 = sadd.s32 1, %s13
    $region7: #{tpu_custom_call.1} parent=1 // loop_footer_branch
      %12 = sbr.rel target = $region3
    $region8: #{tpu_custom_call.1} parent=1 // loop_exit
      _
    %1303 = vsyncpa [#allocation6], 1
    %s1304 = scalar_lea.sflag [#allocation6], 1
    %1305 = vsyncpa %s1304, 1
    %1306 = vsyncpa [#allocation9], 1
    %1307 = vsyncpa [#allocation7], 1
    %s1308 = scalar_lea.sflag [#allocation7], 1
    %1309 = vsyncpa %s1308, 1

</llo_original>
